<compile_context>
chip_gen: v7x
topology: tpu7x:2x2x1
jax: 0.10.0
libtpu: 0.0.40
codegen_flags: <defaults>
</compile_context>

<pallas_src>
import functools

import numpy as np
import jax
import jax.numpy as jnp
from jax import lax
from jax.experimental import pallas as pl
from jax.experimental.pallas import tpu as pltpu


# ----------------------------------------------------------------------------
# Model geometry (consistent with fc = Linear(32*5*5, 1) in the PyTorch spec):
#   conv1: 4 -> 16, k=3, s=2, p=1 : 20x20 -> 10x10
#   conv2: 16 -> 32, k=3, s=2, p=1: 10x10 ->  5x 5
#   fc   : 800 -> 1
# ----------------------------------------------------------------------------
C_IN, H_IN, W_IN = 4, 20, 20
C1, H1, W1 = 16, 10, 10
C2, H2, W2 = 32, 5, 5
K = 3  # conv kernel size


def _selection_tensor(n_in, n_out):
    """S[w, ow, j] = 1  iff  w == 2*ow + j - 1  (stride 2, pad 1, k=3).

    Out-of-range taps (the zero padding) simply get no entry."""
    s = np.zeros((n_in, n_out, K), np.float32)
    for ow in range(n_out):
        for j in range(K):
            w = 2 * ow + j - 1
            if 0 <= w < n_in:
                s[w, ow, j] = 1.0
    return s


def prepare_params(params):
    """One-time re-packing of the PyTorch-layout weights (outside the jitted
    hot path) into the banded-Toeplitz form consumed by the fused kernel.

    A stride-2/pad-1/k=3 conv on a row-major (H, W*Cin) slab X becomes
        Y[oh, ow*Cout + o] = relu( bias + sum_i (L_i @ X) @ Wbig_i )
    with constant
        L_i    (Ho, Hin)          : picks input row 2*oh + i - 1 (H zero-pad folded in)
        Wbig_i (Win*Cin, Wo*Cout) : W-tap structure + W zero-pad folded in.
    """
    w1 = jnp.asarray(params["w1"], jnp.float32)          # (16, 4, 3, 3)  (O,C,kh,kw)
    w2 = jnp.asarray(params["w2"], jnp.float32)          # (32, 16, 3, 3)

    s1 = _selection_tensor(W_IN, W1)                      # (20, 10, 3)
    s2 = _selection_tensor(W1, W2)                        # (10,  5, 3)

    # H-gather matrices, stacked over kernel row i (square images -> reuse S).
    l1 = jnp.asarray(np.transpose(s1, (2, 1, 0)))         # (3, 10, 20)
    l2 = jnp.asarray(np.transpose(s2, (2, 1, 0)))         # (3,  5, 10)

    # Banded weights:  Wbig_i[(w, c), (ow, o)] = w[o, c, i, j],  j = w - 2*ow + 1
    w1big = jnp.einsum("wuj,ocij->iwcuo", jnp.asarray(s1), w1)
    w1big = w1big.reshape(K, W_IN * C_IN, W1 * C1)         # (3, 80, 160)
    w2big = jnp.einsum("wuj,ocij->iwcuo", jnp.asarray(s2), w2)
    w2big = w2big.reshape(K, W1 * C1, W2 * C2)             # (3, 160, 160)

    # Bias rows in the (ow, o) lane layout.
    b1row = jnp.tile(jnp.asarray(params["b1"], jnp.float32), W1).reshape(1, W1 * C1)
    b2row = jnp.tile(jnp.asarray(params["b2"], jnp.float32), W2).reshape(1, W2 * C2)

    # fc weight: PyTorch flatten order is (C2, H2, W2); kernel y2 layout is
    # [oh, ow*C2 + o] -> permute the constant once, no runtime transpose.
    wfc2d = jnp.asarray(params["wfc"], jnp.float32).reshape(C2, H2, W2)
    wfc2d = jnp.transpose(wfc2d, (1, 2, 0)).reshape(H2, W2 * C2)   # (5, 160)
    bfc = jnp.asarray(params["bfc"], jnp.float32).reshape(1, 1)

    return dict(l1=l1, w1big=w1big, b1=b1row,
                l2=l2, w2big=w2big, b2=b2row,
                wfc=wfc2d, bfc=bfc)


# ----------------------------------------------------------------------------
# The fused kernel: conv1 + relu + conv2 + relu + fc, all in VMEM.
# ----------------------------------------------------------------------------
def _cnn_i4_kernel(x_ref, l1_ref, w1_ref, b1_ref, l2_ref, w2_ref, b2_ref,
                   wfc_ref, bfc_ref, o_ref, *, batch):
    for b in range(batch):                                   # static unroll (B tiny)
        xb = x_ref[b]                                        # (20, 80)

        # conv1 + relu  -> (10, 160)  laid out as [oh, ow*16 + o]
        y1 = None
        for i in range(K):
            g = jnp.dot(l1_ref[i], xb, preferred_element_type=jnp.float32)   # (10, 80)
            t = jnp.dot(g, w1_ref[i], preferred_element_type=jnp.float32)    # (10, 160)
            y1 = t if y1 is None else y1 + t
        y1 = jnp.maximum(y1 + b1_ref[...], 0.0)

        # conv2 + relu  -> (5, 160)   laid out as [oh, ow*32 + o]
        y2 = None
        for i in range(K):
            g = jnp.dot(l2_ref[i], y1, preferred_element_type=jnp.float32)   # (5, 160)
            t = jnp.dot(g, w2_ref[i], preferred_element_type=jnp.float32)    # (5, 160)
            y2 = t if y2 is None else y2 + t
        y2 = jnp.maximum(y2 + b2_ref[...], 0.0)

        # fc (800 -> 1) as a fused reduction; wfc was pre-permuted to match
        # y2's layout, so this is exactly PyTorch's x.view(B,-1) @ W.T + b.
        prod = y2 * wfc_ref[...]                                             # (5, 160)
        s = jnp.sum(prod, axis=1, keepdims=True)                             # (5, 1)
        s = jnp.sum(s, axis=0, keepdims=True)                                # (1, 1)
        o_ref[:, b:b + 1] = s + bfc_ref[...]


def _fused_forward_2d(x2d, prep):
    batch = x2d.shape[0]
    kernel = functools.partial(_cnn_i4_kernel, batch=batch)
    vmem = pl.BlockSpec(memory_space=pltpu.MemorySpace.VMEM)
    out = pl.pallas_call(
        kernel,
        out_shape=jax.ShapeDtypeStruct((1, batch), jnp.float32),
        in_specs=[vmem] * 9,
        out_specs=vmem,
    )(x2d, prep["l1"], prep["w1big"], prep["b1"],
      prep["l2"], prep["w2big"], prep["b2"], prep["wfc"], prep["bfc"])
    return out.reshape(batch, 1)


def cnn_i4_forward(x_nchw, prep):
    """x_nchw: (B, 4, 20, 20) float32, PyTorch NCHW layout."""
    b = x_nchw.shape[0]
    # NCHW -> row-major (B, H, W*C) slab (channels fastest within a row): the
    # only XLA op left on the hot path, a tiny transpose of the input.
    x2d = jnp.transpose(x_nchw.astype(jnp.float32), (0, 2, 3, 1))
    x2d = x2d.reshape(b, H_IN, W_IN * C_IN)
    return _fused_forward_2d(x2d, prep)


# ----------------------------------------------------------------------------
# Params (PyTorch layout) + pure-JAX reference for validation
# ----------------------------------------------------------------------------
def init_params(key):
    k1, k2, k3, k4, k5, k6 = jax.random.split(key, 6)
    scale1 = 1.0 / jnp.sqrt(C_IN * K * K)
    scale2 = 1.0 / jnp.sqrt(C1 * K * K)
    scale3 = 1.0 / jnp.sqrt(C2 * H2 * W2)
    return {
        "w1": jax.random.uniform(k1, (C1, C_IN, K, K), jnp.float32, -scale1, scale1),
        "b1": jax.random.uniform(k2, (C1,), jnp.float32, -scale1, scale1),
        "w2": jax.random.uniform(k3, (C2, C1, K, K), jnp.float32, -scale2, scale2),
        "b2": jax.random.uniform(k4, (C2,), jnp.float32, -scale2, scale2),
        "wfc": jax.random.uniform(k5, (1, C2 * H2 * W2), jnp.float32, -scale3, scale3),
        "bfc": jax.random.uniform(k6, (1,), jnp.float32, -scale3, scale3),
    }


def reference_forward(x_nchw, params):
    dn = ("NCHW", "OIHW", "NCHW")
    y = lax.conv_general_dilated(x_nchw, params["w1"], (2, 2), [(1, 1), (1, 1)],
                                 dimension_numbers=dn,
                                 precision=lax.Precision.HIGHEST)
    y = jax.nn.relu(y + params["b1"].reshape(1, -1, 1, 1))
    y = lax.conv_general_dilated(y, params["w2"], (2, 2), [(1, 1), (1, 1)],
                                 dimension_numbers=dn,
                                 precision=lax.Precision.HIGHEST)
    y = jax.nn.relu(y + params["b2"].reshape(1, -1, 1, 1))
    y = y.reshape(y.shape[0], -1)
    return y @ params["wfc"].T + params["bfc"]


if __name__ == "__main__":
    key = jax.random.PRNGKey(0)
    pkey, xkey = jax.random.split(key)
    params = init_params(pkey)
    prep = prepare_params(params)          # one-time weight repack, outside jit

    # Input: NCHW (B=2, C=4, H=W=20), matching fc = Linear(32*5*5, 1).
    x = jax.random.normal(xkey, (2, C_IN, H_IN, W_IN), jnp.float32)

    fwd = jax.jit(cnn_i4_forward)
    out = jax.block_until_ready(fwd(x, prep))
    assert out.shape == (2, 1), out.shape

    ref = jax.block_until_ready(reference_forward(x, params))
    assert jnp.allclose(out, ref, atol=1e-3, rtol=1e-3), (out, ref)

    print("KERNEL_OK")
</pallas_src>

<mosaic_0001>
module attributes {stable_mosaic.version = 11 : i64} {
  func.func @_cnn_i4_kernel(%arg0: memref<2x20x80xf32, #tpu.memory_space<vmem>>, %arg1: memref<3x10x20xf32, #tpu.memory_space<vmem>>, %arg2: memref<3x80x160xf32, #tpu.memory_space<vmem>>, %arg3: memref<1x160xf32, #tpu.memory_space<vmem>>, %arg4: memref<3x5x10xf32, #tpu.memory_space<vmem>>, %arg5: memref<3x160x160xf32, #tpu.memory_space<vmem>>, %arg6: memref<1x160xf32, #tpu.memory_space<vmem>>, %arg7: memref<5x160xf32, #tpu.memory_space<vmem>>, %arg8: memref<1x1xf32, #tpu.memory_space<vmem>>, %arg9: memref<1x2xf32, #tpu.memory_space<vmem>>) attributes {dimension_semantics = [], scalar_prefetch = 0 : i64, scratch_operands = 0 : i64, tpu.core_type = #tpu.core_type<tc>} {
    %c0 = arith.constant 0 : index
    %c0_0 = arith.constant 0 : index
    %c0_1 = arith.constant 0 : index
    %0 = vector.load %arg0[%c0, %c0_0, %c0_1] : memref<2x20x80xf32, #tpu.memory_space<vmem>>, vector<1x20x80xf32>
    %1 = vector.shape_cast %0 : vector<1x20x80xf32> to vector<20x80xf32>
    %c0_2 = arith.constant 0 : index
    %c0_3 = arith.constant 0 : index
    %c0_4 = arith.constant 0 : index
    %2 = vector.load %arg1[%c0_2, %c0_3, %c0_4] : memref<3x10x20xf32, #tpu.memory_space<vmem>>, vector<1x10x20xf32>
    %3 = vector.shape_cast %2 : vector<1x10x20xf32> to vector<10x20xf32>
    %cst = arith.constant dense<0.000000e+00> : vector<10x80xf32>
    %4 = tpu.matmul %3, %1, %cst {dimension_numbers = #tpu.dot_dimension_numbers<[1], [0], [0], [1], [0, 0, 1, 1], [], []>} : vector<10x20xf32>, vector<20x80xf32>, vector<10x80xf32> -> vector<10x80xf32>
    %c0_5 = arith.constant 0 : index
    %c0_6 = arith.constant 0 : index
    %c0_7 = arith.constant 0 : index
    %5 = vector.load %arg2[%c0_5, %c0_6, %c0_7] : memref<3x80x160xf32, #tpu.memory_space<vmem>>, vector<1x80x160xf32>
    %6 = vector.shape_cast %5 : vector<1x80x160xf32> to vector<80x160xf32>
    %cst_8 = arith.constant dense<0.000000e+00> : vector<10x160xf32>
    %7 = tpu.matmul %4, %6, %cst_8 {dimension_numbers = #tpu.dot_dimension_numbers<[1], [0], [0], [1], [0, 0, 1, 1], [], []>} : vector<10x80xf32>, vector<80x160xf32>, vector<10x160xf32> -> vector<10x160xf32>
    %c1 = arith.constant 1 : index
    %c0_9 = arith.constant 0 : index
    %c0_10 = arith.constant 0 : index
    %8 = vector.load %arg1[%c1, %c0_9, %c0_10] : memref<3x10x20xf32, #tpu.memory_space<vmem>>, vector<1x10x20xf32>
    %9 = vector.shape_cast %8 : vector<1x10x20xf32> to vector<10x20xf32>
    %cst_11 = arith.constant dense<0.000000e+00> : vector<10x80xf32>
    %10 = tpu.matmul %9, %1, %cst_11 {dimension_numbers = #tpu.dot_dimension_numbers<[1], [0], [0], [1], [0, 0, 1, 1], [], []>} : vector<10x20xf32>, vector<20x80xf32>, vector<10x80xf32> -> vector<10x80xf32>
    %c1_12 = arith.constant 1 : index
    %c0_13 = arith.constant 0 : index
    %c0_14 = arith.constant 0 : index
    %11 = vector.load %arg2[%c1_12, %c0_13, %c0_14] : memref<3x80x160xf32, #tpu.memory_space<vmem>>, vector<1x80x160xf32>
    %12 = vector.shape_cast %11 : vector<1x80x160xf32> to vector<80x160xf32>
    %cst_15 = arith.constant dense<0.000000e+00> : vector<10x160xf32>
    %13 = tpu.matmul %10, %12, %cst_15 {dimension_numbers = #tpu.dot_dimension_numbers<[1], [0], [0], [1], [0, 0, 1, 1], [], []>} : vector<10x80xf32>, vector<80x160xf32>, vector<10x160xf32> -> vector<10x160xf32>
    %14 = arith.addf %7, %13 : vector<10x160xf32>
    %c2 = arith.constant 2 : index
    %c0_16 = arith.constant 0 : index
    %c0_17 = arith.constant 0 : index
    %15 = vector.load %arg1[%c2, %c0_16, %c0_17] : memref<3x10x20xf32, #tpu.memory_space<vmem>>, vector<1x10x20xf32>
    %16 = vector.shape_cast %15 : vector<1x10x20xf32> to vector<10x20xf32>
    %cst_18 = arith.constant dense<0.000000e+00> : vector<10x80xf32>
    %17 = tpu.matmul %16, %1, %cst_18 {dimension_numbers = #tpu.dot_dimension_numbers<[1], [0], [0], [1], [0, 0, 1, 1], [], []>} : vector<10x20xf32>, vector<20x80xf32>, vector<10x80xf32> -> vector<10x80xf32>
    %c2_19 = arith.constant 2 : index
    %c0_20 = arith.constant 0 : index
    %c0_21 = arith.constant 0 : index
    %18 = vector.load %arg2[%c2_19, %c0_20, %c0_21] : memref<3x80x160xf32, #tpu.memory_space<vmem>>, vector<1x80x160xf32>
    %19 = vector.shape_cast %18 : vector<1x80x160xf32> to vector<80x160xf32>
    %cst_22 = arith.constant dense<0.000000e+00> : vector<10x160xf32>
    %20 = tpu.matmul %17, %19, %cst_22 {dimension_numbers = #tpu.dot_dimension_numbers<[1], [0], [0], [1], [0, 0, 1, 1], [], []>} : vector<10x80xf32>, vector<80x160xf32>, vector<10x160xf32> -> vector<10x160xf32>
    %21 = arith.addf %14, %20 : vector<10x160xf32>
    %c0_23 = arith.constant 0 : index
    %c0_24 = arith.constant 0 : index
    %22 = vector.load %arg3[%c0_23, %c0_24] : memref<1x160xf32, #tpu.memory_space<vmem>>, vector<1x160xf32>
    %23 = vector.broadcast %22 : vector<1x160xf32> to vector<10x160xf32>
    %24 = arith.addf %21, %23 : vector<10x160xf32>
    %cst_25 = arith.constant 0.000000e+00 : f32
    %25 = vector.broadcast %cst_25 : f32 to vector<10x160xf32>
    %26 = arith.maximumf %24, %25 : vector<10x160xf32>
    %c0_26 = arith.constant 0 : index
    %c0_27 = arith.constant 0 : index
    %c0_28 = arith.constant 0 : index
    %27 = vector.load %arg4[%c0_26, %c0_27, %c0_28] : memref<3x5x10xf32, #tpu.memory_space<vmem>>, vector<1x5x10xf32>
    %28 = vector.shape_cast %27 : vector<1x5x10xf32> to vector<5x10xf32>
    %cst_29 = arith.constant dense<0.000000e+00> : vector<5x160xf32>
    %29 = tpu.matmul %28, %26, %cst_29 {dimension_numbers = #tpu.dot_dimension_numbers<[1], [0], [0], [1], [0, 0, 1, 1], [], []>} : vector<5x10xf32>, vector<10x160xf32>, vector<5x160xf32> -> vector<5x160xf32>
    %c0_30 = arith.constant 0 : index
    %c0_31 = arith.constant 0 : index
    %c0_32 = arith.constant 0 : index
    %30 = vector.load %arg5[%c0_30, %c0_31, %c0_32] : memref<3x160x160xf32, #tpu.memory_space<vmem>>, vector<1x160x160xf32>
    %31 = vector.shape_cast %30 : vector<1x160x160xf32> to vector<160x160xf32>
    %cst_33 = arith.constant dense<0.000000e+00> : vector<5x160xf32>
    %32 = tpu.matmul %29, %31, %cst_33 {dimension_numbers = #tpu.dot_dimension_numbers<[1], [0], [0], [1], [0, 0, 1, 1], [], []>} : vector<5x160xf32>, vector<160x160xf32>, vector<5x160xf32> -> vector<5x160xf32>
    %c1_34 = arith.constant 1 : index
    %c0_35 = arith.constant 0 : index
    %c0_36 = arith.constant 0 : index
    %33 = vector.load %arg4[%c1_34, %c0_35, %c0_36] : memref<3x5x10xf32, #tpu.memory_space<vmem>>, vector<1x5x10xf32>
    %34 = vector.shape_cast %33 : vector<1x5x10xf32> to vector<5x10xf32>
    %cst_37 = arith.constant dense<0.000000e+00> : vector<5x160xf32>
    %35 = tpu.matmul %34, %26, %cst_37 {dimension_numbers = #tpu.dot_dimension_numbers<[1], [0], [0], [1], [0, 0, 1, 1], [], []>} : vector<5x10xf32>, vector<10x160xf32>, vector<5x160xf32> -> vector<5x160xf32>
    %c1_38 = arith.constant 1 : index
    %c0_39 = arith.constant 0 : index
    %c0_40 = arith.constant 0 : index
    %36 = vector.load %arg5[%c1_38, %c0_39, %c0_40] : memref<3x160x160xf32, #tpu.memory_space<vmem>>, vector<1x160x160xf32>
    %37 = vector.shape_cast %36 : vector<1x160x160xf32> to vector<160x160xf32>
    %cst_41 = arith.constant dense<0.000000e+00> : vector<5x160xf32>
    %38 = tpu.matmul %35, %37, %cst_41 {dimension_numbers = #tpu.dot_dimension_numbers<[1], [0], [0], [1], [0, 0, 1, 1], [], []>} : vector<5x160xf32>, vector<160x160xf32>, vector<5x160xf32> -> vector<5x160xf32>
    %39 = arith.addf %32, %38 : vector<5x160xf32>
    %c2_42 = arith.constant 2 : index
    %c0_43 = arith.constant 0 : index
    %c0_44 = arith.constant 0 : index
    %40 = vector.load %arg4[%c2_42, %c0_43, %c0_44] : memref<3x5x10xf32, #tpu.memory_space<vmem>>, vector<1x5x10xf32>
    %41 = vector.shape_cast %40 : vector<1x5x10xf32> to vector<5x10xf32>
    %cst_45 = arith.constant dense<0.000000e+00> : vector<5x160xf32>
    %42 = tpu.matmul %41, %26, %cst_45 {dimension_numbers = #tpu.dot_dimension_numbers<[1], [0], [0], [1], [0, 0, 1, 1], [], []>} : vector<5x10xf32>, vector<10x160xf32>, vector<5x160xf32> -> vector<5x160xf32>
    %c2_46 = arith.constant 2 : index
    %c0_47 = arith.constant 0 : index
    %c0_48 = arith.constant 0 : index
    %43 = vector.load %arg5[%c2_46, %c0_47, %c0_48] : memref<3x160x160xf32, #tpu.memory_space<vmem>>, vector<1x160x160xf32>
    %44 = vector.shape_cast %43 : vector<1x160x160xf32> to vector<160x160xf32>
    %cst_49 = arith.constant dense<0.000000e+00> : vector<5x160xf32>
    %45 = tpu.matmul %42, %44, %cst_49 {dimension_numbers = #tpu.dot_dimension_numbers<[1], [0], [0], [1], [0, 0, 1, 1], [], []>} : vector<5x160xf32>, vector<160x160xf32>, vector<5x160xf32> -> vector<5x160xf32>
    %46 = arith.addf %39, %45 : vector<5x160xf32>
    %c0_50 = arith.constant 0 : index
    %c0_51 = arith.constant 0 : index
    %47 = vector.load %arg6[%c0_50, %c0_51] : memref<1x160xf32, #tpu.memory_space<vmem>>, vector<1x160xf32>
    %48 = vector.broadcast %47 : vector<1x160xf32> to vector<5x160xf32>
    %49 = arith.addf %46, %48 : vector<5x160xf32>
    %cst_52 = arith.constant 0.000000e+00 : f32
    %50 = vector.broadcast %cst_52 : f32 to vector<5x160xf32>
    %51 = arith.maximumf %49, %50 : vector<5x160xf32>
    %c0_53 = arith.constant 0 : index
    %c0_54 = arith.constant 0 : index
    %52 = vector.load %arg7[%c0_53, %c0_54] : memref<5x160xf32, #tpu.memory_space<vmem>>, vector<5x160xf32>
    %53 = arith.mulf %51, %52 : vector<5x160xf32>
    %cst_55 = arith.constant dense<0.000000e+00> : vector<5xf32>
    %54 = vector.multi_reduction <add>, %53, %cst_55 [1] : vector<5x160xf32> to vector<5xf32>
    %55 = vector.shape_cast %54 : vector<5xf32> to vector<5x1xf32>
    %cst_56 = arith.constant dense<0.000000e+00> : vector<1xf32>
    %56 = vector.multi_reduction <add>, %55, %cst_56 [0] : vector<5x1xf32> to vector<1xf32>
    %57 = vector.shape_cast %56 : vector<1xf32> to vector<1x1xf32>
    %c0_57 = arith.constant 0 : index
    %c0_58 = arith.constant 0 : index
    %58 = vector.load %arg8[%c0_57, %c0_58] : memref<1x1xf32, #tpu.memory_space<vmem>>, vector<1x1xf32>
    %59 = arith.addf %57, %58 : vector<1x1xf32>
    %c0_59 = arith.constant 0 : index
    %c0_60 = arith.constant 0 : index
    %60 = vector.load %arg9[%c0_59, %c0_60] : memref<1x2xf32, #tpu.memory_space<vmem>>, vector<1x1xf32>
    tpu.vector_store %arg9[%c0_59, %c0_60], %59 {strides = array<i32>} : memref<1x2xf32, #tpu.memory_space<vmem>>, vector<1x1xf32>,
    %c1_61 = arith.constant 1 : index
    %c0_62 = arith.constant 0 : index
    %c0_63 = arith.constant 0 : index
    %61 = vector.load %arg0[%c1_61, %c0_62, %c0_63] : memref<2x20x80xf32, #tpu.memory_space<vmem>>, vector<1x20x80xf32>
    %62 = vector.shape_cast %61 : vector<1x20x80xf32> to vector<20x80xf32>
    %c0_64 = arith.constant 0 : index
    %c0_65 = arith.constant 0 : index
    %c0_66 = arith.constant 0 : index
    %63 = vector.load %arg1[%c0_64, %c0_65, %c0_66] : memref<3x10x20xf32, #tpu.memory_space<vmem>>, vector<1x10x20xf32>
    %64 = vector.shape_cast %63 : vector<1x10x20xf32> to vector<10x20xf32>
    %cst_67 = arith.constant dense<0.000000e+00> : vector<10x80xf32>
    %65 = tpu.matmul %64, %62, %cst_67 {dimension_numbers = #tpu.dot_dimension_numbers<[1], [0], [0], [1], [0, 0, 1, 1], [], []>} : vector<10x20xf32>, vector<20x80xf32>, vector<10x80xf32> -> vector<10x80xf32>
    %c0_68 = arith.constant 0 : index
    %c0_69 = arith.constant 0 : index
    %c0_70 = arith.constant 0 : index
    %66 = vector.load %arg2[%c0_68, %c0_69, %c0_70] : memref<3x80x160xf32, #tpu.memory_space<vmem>>, vector<1x80x160xf32>
    %67 = vector.shape_cast %66 : vector<1x80x160xf32> to vector<80x160xf32>
    %cst_71 = arith.constant dense<0.000000e+00> : vector<10x160xf32>
    %68 = tpu.matmul %65, %67, %cst_71 {dimension_numbers = #tpu.dot_dimension_numbers<[1], [0], [0], [1], [0, 0, 1, 1], [], []>} : vector<10x80xf32>, vector<80x160xf32>, vector<10x160xf32> -> vector<10x160xf32>
    %c1_72 = arith.constant 1 : index
    %c0_73 = arith.constant 0 : index
    %c0_74 = arith.constant 0 : index
    %69 = vector.load %arg1[%c1_72, %c0_73, %c0_74] : memref<3x10x20xf32, #tpu.memory_space<vmem>>, vector<1x10x20xf32>
    %70 = vector.shape_cast %69 : vector<1x10x20xf32> to vector<10x20xf32>
    %cst_75 = arith.constant dense<0.000000e+00> : vector<10x80xf32>
    %71 = tpu.matmul %70, %62, %cst_75 {dimension_numbers = #tpu.dot_dimension_numbers<[1], [0], [0], [1], [0, 0, 1, 1], [], []>} : vector<10x20xf32>, vector<20x80xf32>, vector<10x80xf32> -> vector<10x80xf32>
    %c1_76 = arith.constant 1 : index
    %c0_77 = arith.constant 0 : index
    %c0_78 = arith.constant 0 : index
    %72 = vector.load %arg2[%c1_76, %c0_77, %c0_78] : memref<3x80x160xf32, #tpu.memory_space<vmem>>, vector<1x80x160xf32>
    %73 = vector.shape_cast %72 : vector<1x80x160xf32> to vector<80x160xf32>
    %cst_79 = arith.constant dense<0.000000e+00> : vector<10x160xf32>
    %74 = tpu.matmul %71, %73, %cst_79 {dimension_numbers = #tpu.dot_dimension_numbers<[1], [0], [0], [1], [0, 0, 1, 1], [], []>} : vector<10x80xf32>, vector<80x160xf32>, vector<10x160xf32> -> vector<10x160xf32>
    %75 = arith.addf %68, %74 : vector<10x160xf32>
    %c2_80 = arith.constant 2 : index
    %c0_81 = arith.constant 0 : index
    %c0_82 = arith.constant 0 : index
    %76 = vector.load %arg1[%c2_80, %c0_81, %c0_82] : memref<3x10x20xf32, #tpu.memory_space<vmem>>, vector<1x10x20xf32>
    %77 = vector.shape_cast %76 : vector<1x10x20xf32> to vector<10x20xf32>
    %cst_83 = arith.constant dense<0.000000e+00> : vector<10x80xf32>
    %78 = tpu.matmul %77, %62, %cst_83 {dimension_numbers = #tpu.dot_dimension_numbers<[1], [0], [0], [1], [0, 0, 1, 1], [], []>} : vector<10x20xf32>, vector<20x80xf32>, vector<10x80xf32> -> vector<10x80xf32>
    %c2_84 = arith.constant 2 : index
    %c0_85 = arith.constant 0 : index
    %c0_86 = arith.constant 0 : index
    %79 = vector.load %arg2[%c2_84, %c0_85, %c0_86] : memref<3x80x160xf32, #tpu.memory_space<vmem>>, vector<1x80x160xf32>
    %80 = vector.shape_cast %79 : vector<1x80x160xf32> to vector<80x160xf32>
    %cst_87 = arith.constant dense<0.000000e+00> : vector<10x160xf32>
    %81 = tpu.matmul %78, %80, %cst_87 {dimension_numbers = #tpu.dot_dimension_numbers<[1], [0], [0], [1], [0, 0, 1, 1], [], []>} : vector<10x80xf32>, vector<80x160xf32>, vector<10x160xf32> -> vector<10x160xf32>
    %82 = arith.addf %75, %81 : vector<10x160xf32>
    %c0_88 = arith.constant 0 : index
    %c0_89 = arith.constant 0 : index
    %83 = vector.load %arg3[%c0_88, %c0_89] : memref<1x160xf32, #tpu.memory_space<vmem>>, vector<1x160xf32>
    %84 = vector.broadcast %83 : vector<1x160xf32> to vector<10x160xf32>
    %85 = arith.addf %82, %84 : vector<10x160xf32>
    %cst_90 = arith.constant 0.000000e+00 : f32
    %86 = vector.broadcast %cst_90 : f32 to vector<10x160xf32>
    %87 = arith.maximumf %85, %86 : vector<10x160xf32>
    %c0_91 = arith.constant 0 : index
    %c0_92 = arith.constant 0 : index
    %c0_93 = arith.constant 0 : index
    %88 = vector.load %arg4[%c0_91, %c0_92, %c0_93] : memref<3x5x10xf32, #tpu.memory_space<vmem>>, vector<1x5x10xf32>
    %89 = vector.shape_cast %88 : vector<1x5x10xf32> to vector<5x10xf32>
    %cst_94 = arith.constant dense<0.000000e+00> : vector<5x160xf32>
    %90 = tpu.matmul %89, %87, %cst_94 {dimension_numbers = #tpu.dot_dimension_numbers<[1], [0], [0], [1], [0, 0, 1, 1], [], []>} : vector<5x10xf32>, vector<10x160xf32>, vector<5x160xf32> -> vector<5x160xf32>
    %c0_95 = arith.constant 0 : index
    %c0_96 = arith.constant 0 : index
    %c0_97 = arith.constant 0 : index
    %91 = vector.load %arg5[%c0_95, %c0_96, %c0_97] : memref<3x160x160xf32, #tpu.memory_space<vmem>>, vector<1x160x160xf32>
    %92 = vector.shape_cast %91 : vector<1x160x160xf32> to vector<160x160xf32>
    %cst_98 = arith.constant dense<0.000000e+00> : vector<5x160xf32>
    %93 = tpu.matmul %90, %92, %cst_98 {dimension_numbers = #tpu.dot_dimension_numbers<[1], [0], [0], [1], [0, 0, 1, 1], [], []>} : vector<5x160xf32>, vector<160x160xf32>, vector<5x160xf32> -> vector<5x160xf32>
    %c1_99 = arith.constant 1 : index
    %c0_100 = arith.constant 0 : index
    %c0_101 = arith.constant 0 : index
    %94 = vector.load %arg4[%c1_99, %c0_100, %c0_101] : memref<3x5x10xf32, #tpu.memory_space<vmem>>, vector<1x5x10xf32>
    %95 = vector.shape_cast %94 : vector<1x5x10xf32> to vector<5x10xf32>
    %cst_102 = arith.constant dense<0.000000e+00> : vector<5x160xf32>
    %96 = tpu.matmul %95, %87, %cst_102 {dimension_numbers = #tpu.dot_dimension_numbers<[1], [0], [0], [1], [0, 0, 1, 1], [], []>} : vector<5x10xf32>, vector<10x160xf32>, vector<5x160xf32> -> vector<5x160xf32>
    %c1_103 = arith.constant 1 : index
    %c0_104 = arith.constant 0 : index
    %c0_105 = arith.constant 0 : index
    %97 = vector.load %arg5[%c1_103, %c0_104, %c0_105] : memref<3x160x160xf32, #tpu.memory_space<vmem>>, vector<1x160x160xf32>
    %98 = vector.shape_cast %97 : vector<1x160x160xf32> to vector<160x160xf32>
    %cst_106 = arith.constant dense<0.000000e+00> : vector<5x160xf32>
    %99 = tpu.matmul %96, %98, %cst_106 {dimension_numbers = #tpu.dot_dimension_numbers<[1], [0], [0], [1], [0, 0, 1, 1], [], []>} : vector<5x160xf32>, vector<160x160xf32>, vector<5x160xf32> -> vector<5x160xf32>
    %100 = arith.addf %93, %99 : vector<5x160xf32>
    %c2_107 = arith.constant 2 : index
    %c0_108 = arith.constant 0 : index
    %c0_109 = arith.constant 0 : index
    %101 = vector.load %arg4[%c2_107, %c0_108, %c0_109] : memref<3x5x10xf32, #tpu.memory_space<vmem>>, vector<1x5x10xf32>
    %102 = vector.shape_cast %101 : vector<1x5x10xf32> to vector<5x10xf32>
    %cst_110 = arith.constant dense<0.000000e+00> : vector<5x160xf32>
    %103 = tpu.matmul %102, %87, %cst_110 {dimension_numbers = #tpu.dot_dimension_numbers<[1], [0], [0], [1], [0, 0, 1, 1], [], []>} : vector<5x10xf32>, vector<10x160xf32>, vector<5x160xf32> -> vector<5x160xf32>
    %c2_111 = arith.constant 2 : index
    %c0_112 = arith.constant 0 : index
    %c0_113 = arith.constant 0 : index
    %104 = vector.load %arg5[%c2_111, %c0_112, %c0_113] : memref<3x160x160xf32, #tpu.memory_space<vmem>>, vector<1x160x160xf32>
    %105 = vector.shape_cast %104 : vector<1x160x160xf32> to vector<160x160xf32>
    %cst_114 = arith.constant dense<0.000000e+00> : vector<5x160xf32>
    %106 = tpu.matmul %103, %105, %cst_114 {dimension_numbers = #tpu.dot_dimension_numbers<[1], [0], [0], [1], [0, 0, 1, 1], [], []>} : vector<5x160xf32>, vector<160x160xf32>, vector<5x160xf32> -> vector<5x160xf32>
    %107 = arith.addf %100, %106 : vector<5x160xf32>
    %c0_115 = arith.constant 0 : index
    %c0_116 = arith.constant 0 : index
    %108 = vector.load %arg6[%c0_115, %c0_116] : memref<1x160xf32, #tpu.memory_space<vmem>>, vector<1x160xf32>
    %109 = vector.broadcast %108 : vector<1x160xf32> to vector<5x160xf32>
    %110 = arith.addf %107, %109 : vector<5x160xf32>
    %cst_117 = arith.constant 0.000000e+00 : f32
    %111 = vector.broadcast %cst_117 : f32 to vector<5x160xf32>
    %112 = arith.maximumf %110, %111 : vector<5x160xf32>
    %c0_118 = arith.constant 0 : index
    %c0_119 = arith.constant 0 : index
    %113 = vector.load %arg7[%c0_118, %c0_119] : memref<5x160xf32, #tpu.memory_space<vmem>>, vector<5x160xf32>
    %114 = arith.mulf %112, %113 : vector<5x160xf32>
    %cst_120 = arith.constant dense<0.000000e+00> : vector<5xf32>
    %115 = vector.multi_reduction <add>, %114, %cst_120 [1] : vector<5x160xf32> to vector<5xf32>
    %116 = vector.shape_cast %115 : vector<5xf32> to vector<5x1xf32>
    %cst_121 = arith.constant dense<0.000000e+00> : vector<1xf32>
    %117 = vector.multi_reduction <add>, %116, %cst_121 [0] : vector<5x1xf32> to vector<1xf32>
    %118 = vector.shape_cast %117 : vector<1xf32> to vector<1x1xf32>
    %c0_122 = arith.constant 0 : index
    %c0_123 = arith.constant 0 : index
    %119 = vector.load %arg8[%c0_122, %c0_123] : memref<1x1xf32, #tpu.memory_space<vmem>>, vector<1x1xf32>
    %120 = arith.addf %118, %119 : vector<1x1xf32>
    %c0_124 = arith.constant 0 : index
    %c1_125 = arith.constant 1 : index
    %121 = vector.load %arg9[%c0_124, %c1_125] : memref<1x2xf32, #tpu.memory_space<vmem>>, vector<1x1xf32>
    tpu.vector_store %arg9[%c0_124, %c1_125], %120 {strides = array<i32>} : memref<1x2xf32, #tpu.memory_space<vmem>>, vector<1x1xf32>,
    return
  }
}

</mosaic_0001>

<llo_original>
// kernel: cnn_i4_forward.1
$region0: #{cnn_i4_forward.1}
  #allocation0 [shape = 'u32[]', space=smem, size = 0x4, offset = 0x4, fixed_abs, tag = 'smem constant byte address 0x4 - core index']
  #allocation1 [shape = 'u32[144,128]{1,0:T(1,128)}', space=vmem, size = 0x12000, scoped, tag = 'internal scratch']
  #allocation2 [shape = 'f32[1,1]{1,0:T(1,128)S(1)}', space=vmem, size = 0x200, scoped, tag = 'scoped memory for cnn_i4_forward.1']
  %s0 = inlined_call_operand.vmem [shape: f32[2,20,80], index: 0, kind: input, shape index: {}]
  %s1 = inlined_call_operand.vmem [shape: f32[3,10,20], index: 1, kind: input, shape index: {}]
  %s2 = inlined_call_operand.vmem [shape: f32[3,80,160], index: 2, kind: input, shape index: {}]
  %s3 = inlined_call_operand.vmem [shape: f32[1,160], index: 3, kind: input, shape index: {}]
  %s4 = inlined_call_operand.vmem [shape: f32[3,5,10], index: 4, kind: input, shape index: {}]
  %s5 = inlined_call_operand.hbm [shape: f32[3,160,160], index: 5, kind: input, shape index: {}]
  %s6 = inlined_call_operand.vmem [shape: f32[1,160], index: 6, kind: input, shape index: {}]
  %s7 = inlined_call_operand.vmem [shape: f32[5,160], index: 7, kind: input, shape index: {}]
  %s8 = inlined_call_operand.<no memory space> [shape: f32[1,1], index: 8, kind: input, shape index: {}]
  %s9 = inlined_call_operand.hbm [shape: f32[1,2], index: 9, kind: output, shape index: {}]
  %s10 = sld [smem:[#allocation0]]
  $region50: #{cnn_i4_forward.1} parent=0
    _
  %s12 = ssub.s32 1, %s10
  %s13 = scalar_select 0, %s12, %s10
  %v14 = vstv %s8
  %15 = vst [vmem:[#allocation2] sm:$0x1] %v14
  $region1: #{cnn_i4_forward.1} parent=0
    #allocation3 [shape = 'u8[491520]{0}', space=vmem, size = 0x78000, scoped, tag = 'input window, operand 5, single buffered']
    #allocation4 [shape = 's32[1]{0}', space=sflag, size = 0x4, scoped, tag = 'scoped memory for cnn_i4_forward.1']
    #allocation5 [shape = 's32[1]{0}', space=sflag, size = 0x4, scoped, tag = 'scoped memory for cnn_i4_forward.1']
    #allocation6 [shape = 'u8[512]{0}', space=vmem, size = 0x400, scoped, tag = 'output window, operand 0, single buffered']
    %16 = vsyncpa [#allocation4], 0
    %17 = vsyncpa [#allocation5], 0
    // Predicated region
    $region2: #{cnn_i4_forward.1} parent=1 // pred_check
      _
    $region3: #{cnn_i4_forward.1} parent=1 // pred_check_branch
      %19 = sbr.rel (0) target = $region5
    $region4: #{cnn_i4_forward.1} parent=1 // pred_region
      _
    $region5: #{cnn_i4_forward.1} parent=1 // pred_fallthru
      _
    // Predicated region
    $region6: #{cnn_i4_forward.1} parent=1 // pred_check
      _
    $region7: #{cnn_i4_forward.1} parent=1 // pred_check_branch
      %21 = sbr.rel (0) target = $region9
    $region8: #{cnn_i4_forward.1} parent=1 // pred_region
      _
    $region9: #{cnn_i4_forward.1} parent=1 // pred_fallthru
      _
    // Predicated region
    $region10: #{cnn_i4_forward.1} parent=1 // pred_check
      _
    $region11: #{cnn_i4_forward.1} parent=1 // pred_check_branch
      %23 = sbr.rel (0) target = $region13
    $region12: #{cnn_i4_forward.1} parent=1 // pred_region
      _
    $region13: #{cnn_i4_forward.1} parent=1 // pred_fallthru
      _
    // Predicated region
    $region14: #{cnn_i4_forward.1} parent=1 // pred_check
      _
    $region15: #{cnn_i4_forward.1} parent=1 // pred_check_branch
      %25 = sbr.rel (0) target = $region17
    $region16: #{cnn_i4_forward.1} parent=1 // pred_region
      _
    $region17: #{cnn_i4_forward.1} parent=1 // pred_fallthru
      _
    // Predicated region
    $region18: #{cnn_i4_forward.1} parent=1 // pred_check
      _
    $region19: #{cnn_i4_forward.1} parent=1 // pred_check_branch
      %27 = sbr.rel (0) target = $region21
    $region20: #{cnn_i4_forward.1} parent=1 // pred_region
      _
    $region21: #{cnn_i4_forward.1} parent=1 // pred_fallthru
      _
    // Predicated region
    $region22: #{cnn_i4_forward.1} parent=1 // pred_check
      _
    $region23: #{cnn_i4_forward.1} parent=1 // pred_check_branch
      %29 = sbr.rel (0) target = $region25
    $region24: #{cnn_i4_forward.1} parent=1 // pred_region
      %s31 = ssub.s32 15360, 15360
      %32 = vsyncadd [#allocation4], %s31
      %s33 = sshll.u32 [#allocation3], 4
      %s34 = int_to_ptr.vmem [resolvable:$true] %s33
      %39 = dma.hbm_to_vmem [thread:$0]  %s5, 15360, %s34, [#allocation4], 256, 256, 16
    $region25: #{cnn_i4_forward.1} parent=1 // pred_fallthru
      _
    // Predicated region
    $region26: #{cnn_i4_forward.1} parent=1 // pred_check
      _
    $region27: #{cnn_i4_forward.1} parent=1 // pred_check_branch
      %41 = sbr.rel (0) target = $region29
    $region28: #{cnn_i4_forward.1} parent=1 // pred_region
      _
    $region29: #{cnn_i4_forward.1} parent=1 // pred_fallthru
      _
    // Predicated region
    $region30: #{cnn_i4_forward.1} parent=1 // pred_check
      _
    $region31: #{cnn_i4_forward.1} parent=1 // pred_check_branch
      %43 = sbr.rel (0) target = $region33
    $region32: #{cnn_i4_forward.1} parent=1 // pred_region
      _
    $region33: #{cnn_i4_forward.1} parent=1 // pred_fallthru
      _
    // Predicated region
    $region34: #{cnn_i4_forward.1} parent=1 // pred_check
      _
    $region35: #{cnn_i4_forward.1} parent=1 // pred_check_branch
      %45 = sbr.rel (0) target = $region37
    $region36: #{cnn_i4_forward.1} parent=1 // pred_region
      _
    $region37: #{cnn_i4_forward.1} parent=1 // pred_fallthru
      _
    // Predicated region
    $region38: #{cnn_i4_forward.1} parent=1 // pred_check
      _
    $region39: #{cnn_i4_forward.1} parent=1 // pred_check_branch
      %47 = sbr.rel (0) target = $region41
    $region40: #{cnn_i4_forward.1} parent=1 // pred_region
      %48 = dma.done [#allocation4], 15360
    $region41: #{cnn_i4_forward.1} parent=1 // pred_fallthru
      _
    %v49 = vld [vmem:[%s0] sm:$0xff]
    %v50 = vld [vmem:[%s0 + $0x8] sm:$0xff]
    %v51 = vld [vmem:[%s0 + $0x10] sm:$0xf]
    %v52 = vld [vmem:[%s1] sm:$0xff]
    %v53 = vld [vmem:[%s1 + $0x8] sm:$0x3]
    %vm54 = vcmask 162816
    %v56 = vsel %vm54, %v52, 0
    %v59 = vsel %vm54, %v53, 0
    %vm61 = vcmask 1043456
    %v63 = vsel %vm61, %v51, 0
    %65 = vmatprep.subr.mxu0 0.0
    %66 = vmatpush1.msra.mxu0 %v49
    %67 = vmatprep.subr.mxu0 0.0
    %68 = vmatpush1.msra.mxu0 %v50
    %69 = vmatprep.subr.mxu0 0.0
    %70 = vmatpush1.msra.mxu0 %v63
    %71 = vmatprep.subr.mxu0 0.0
    %72 = vmatpush1.msra.mxu0 0.0
    %73 = vmatprep.subr.mxu0 0.0
    %74 = vmatpush1.msra.mxu0 0.0
    %75 = vmatprep.subr.mxu0 0.0
    %76 = vmatpush1.msra.mxu0 0.0
    %77 = vmatprep.subr.mxu0 0.0
    %78 = vmatpush1.msra.mxu0 0.0
    %79 = vmatprep.subr.mxu0 0.0
    %80 = vmatpush1.msra.mxu0 0.0
    %81 = vmatprep.subr.mxu0 0.0
    %82 = vmatpush1.msra.mxu0 0.0
    %83 = vmatprep.subr.mxu0 0.0
    %84 = vmatpush1.msra.mxu0 0.0
    %85 = vmatprep.subr.mxu0 0.0
    %86 = vmatpush1.msra.mxu0 0.0
    %87 = vmatprep.subr.mxu0 0.0
    %88 = vmatpush1.msra.mxu0 0.0
    %89 = vmatprep.subr.mxu0 0.0
    %90 = vmatpush1.msra.mxu0 0.0
    %91 = vmatprep.subr.mxu0 0.0
    %92 = vmatpush1.msra.mxu0 0.0
    %93 = vmatprep.subr.mxu0 0.0
    %94 = vmatpush1.msra.mxu0 0.0
    %95 = vmatprep.subr.mxu0 0.0
    %96 = vmatpush1.msra.mxu0 0.0
    %97 = vmatprep.subr.mxu0 0.0
    %98 = vmatpush1.msra.mxu0 0.0
    %99 = vmatprep.subr.mxu0 0.0
    %100 = vmatpush1.msra.mxu0 0.0
    %101 = vmatprep.subr.mxu0 0.0
    %102 = vmatpush1.msra.mxu0 0.0
    %103 = vmatprep.subr.mxu0 0.0
    %104 = vmatpush1.msra.mxu0 0.0
    %105 = vmatprep.subr.mxu0 0.0
    %106 = vmatpush1.msra.mxu0 0.0
    %107 = vmatprep.subr.mxu0 0.0
    %108 = vmatpush1.msra.mxu0 0.0
    %109 = vmatprep.subr.mxu0 0.0
    %110 = vmatpush1.msra.mxu0 0.0
    %111 = vmatprep.subr.mxu0 0.0
    %112 = vmatpush1.msra.mxu0 0.0
    %113 = vmatprep.subr.mxu0 0.0
    %114 = vmatpush1.msra.mxu0 0.0
    %115 = vmatprep.subr.mxu0 0.0
    %116 = vmatpush1.msra.mxu0 0.0
    %117 = vmatprep.subr.mxu0 0.0
    %118 = vmatpush1.msra.mxu0 0.0
    %119 = vmatprep.subr.mxu0 0.0
    %120 = vmatpush1.msra.mxu0 0.0
    %121 = vmatprep.subr.mxu0 0.0
    %122 = vmatpush1.msra.mxu0 0.0
    %123 = vmatprep.subr.mxu0 0.0
    %124 = vmatpush1.msra.mxu0 0.0
    %125 = vmatprep.subr.mxu0 0.0
    %126 = vmatpush1.msra.mxu0 0.0
    %127 = vmatprep.subr.mxu0 0.0
    %128 = vmatpush1.msra.mxu0 0.0
    %129 = vmatprep.mubr.f32.mxu0 0.0
    %130 = vmatmul.mubr.f32.gmra.mrb[0].mxu0 %v56
    %v131 = vpop.f32.mrb[0].mxu0
    %v132 = vadd.f32 0.0, %v131
    %v133 = vpop.f32.mrb[0].mxu0
    %134 = vmatprep.mubr.f32.mxu0 0.0
    %135 = vmatmul.mubr.f32.gmra.mrb[0].mxu0 %v59
    %v136 = vpop.f32.mrb[0].mxu0
    %v137 = vadd.f32 0.0, %v136
    %v138 = vpop.f32.mrb[0].mxu0
    %139 = vdwg.mxu0
    %v140 = vld [vmem:[%s2] sm:$0xff]
    %v141 = vld [vmem:[%s2 + $0x8] sm:$0xff]
    %v142 = vld [vmem:[%s2 + $0x10] sm:$0xff]
    %v143 = vld [vmem:[%s2 + $0x18] sm:$0xff]
    %v144 = vld [vmem:[%s2 + $0x20] sm:$0xff]
    %v145 = vld [vmem:[%s2 + $0x28] sm:$0xff]
    %v146 = vld [vmem:[%s2 + $0x30] sm:$0xff]
    %v147 = vld [vmem:[%s2 + $0x38] sm:$0xff]
    %v148 = vld [vmem:[%s2 + $0x40] sm:$0xff]
    %v149 = vld [vmem:[%s2 + $0x48] sm:$0xff]
    %v150 = vld [vmem:[%s2 + $0x50] sm:$0xff]
    %v151 = vld [vmem:[%s2 + $0x58] sm:$0xff]
    %v152 = vld [vmem:[%s2 + $0x60] sm:$0xff]
    %v153 = vld [vmem:[%s2 + $0x68] sm:$0xff]
    %v154 = vld [vmem:[%s2 + $0x70] sm:$0xff]
    %v155 = vld [vmem:[%s2 + $0x78] sm:$0xff]
    %v156 = vld [vmem:[%s2 + $0x80] sm:$0xff]
    %v157 = vld [vmem:[%s2 + $0x88] sm:$0xff]
    %v158 = vld [vmem:[%s2 + $0x90] sm:$0xff]
    %v159 = vld [vmem:[%s2 + $0x98] sm:$0xff]
    %s160 = scalar_lea.vmem %s1, 16
    %v161 = vld [vmem:[%s160] sm:$0xff]
    %v162 = vld [vmem:[%s160 + $0x8] sm:$0x3]
    %v164 = vsel %vm54, %v161, 0
    %v167 = vsel %vm54, %v162, 0
    %169 = vmatprep.subr.mxu0 0.0
    %170 = vmatpush1.msra.mxu0 %v49
    %171 = vmatprep.subr.mxu0 0.0
    %172 = vmatpush1.msra.mxu0 %v50
    %173 = vmatprep.subr.mxu0 0.0
    %174 = vmatpush1.msra.mxu0 %v63
    %175 = vmatprep.subr.mxu0 0.0
    %176 = vmatpush1.msra.mxu0 0.0
    %177 = vmatprep.subr.mxu0 0.0
    %178 = vmatpush1.msra.mxu0 0.0
    %179 = vmatprep.subr.mxu0 0.0
    %180 = vmatpush1.msra.mxu0 0.0
    %181 = vmatprep.subr.mxu0 0.0
    %182 = vmatpush1.msra.mxu0 0.0
    %183 = vmatprep.subr.mxu0 0.0
    %184 = vmatpush1.msra.mxu0 0.0
    %185 = vmatprep.subr.mxu0 0.0
    %186 = vmatpush1.msra.mxu0 0.0
    %187 = vmatprep.subr.mxu0 0.0
    %188 = vmatpush1.msra.mxu0 0.0
    %189 = vmatprep.subr.mxu0 0.0
    %190 = vmatpush1.msra.mxu0 0.0
    %191 = vmatprep.subr.mxu0 0.0
    %192 = vmatpush1.msra.mxu0 0.0
    %193 = vmatprep.subr.mxu0 0.0
    %194 = vmatpush1.msra.mxu0 0.0
    %195 = vmatprep.subr.mxu0 0.0
    %196 = vmatpush1.msra.mxu0 0.0
    %197 = vmatprep.subr.mxu0 0.0
    %198 = vmatpush1.msra.mxu0 0.0
    %199 = vmatprep.subr.mxu0 0.0
    %200 = vmatpush1.msra.mxu0 0.0
    %201 = vmatprep.subr.mxu0 0.0
    %202 = vmatpush1.msra.mxu0 0.0
    %203 = vmatprep.subr.mxu0 0.0
    %204 = vmatpush1.msra.mxu0 0.0
    %205 = vmatprep.subr.mxu0 0.0
    %206 = vmatpush1.msra.mxu0 0.0
    %207 = vmatprep.subr.mxu0 0.0
    %208 = vmatpush1.msra.mxu0 0.0
    %209 = vmatprep.subr.mxu0 0.0
    %210 = vmatpush1.msra.mxu0 0.0
    %211 = vmatprep.subr.mxu0 0.0
    %212 = vmatpush1.msra.mxu0 0.0
    %213 = vmatprep.subr.mxu0 0.0
    %214 = vmatpush1.msra.mxu0 0.0
    %215 = vmatprep.subr.mxu0 0.0
    %216 = vmatpush1.msra.mxu0 0.0
    %217 = vmatprep.subr.mxu0 0.0
    %218 = vmatpush1.msra.mxu0 0.0
    %219 = vmatprep.subr.mxu0 0.0
    %220 = vmatpush1.msra.mxu0 0.0
    %221 = vmatprep.subr.mxu0 0.0
    %222 = vmatpush1.msra.mxu0 0.0
    %223 = vmatprep.subr.mxu0 0.0
    %224 = vmatpush1.msra.mxu0 0.0
    %225 = vmatprep.subr.mxu0 0.0
    %226 = vmatpush1.msra.mxu0 0.0
    %227 = vmatprep.subr.mxu0 0.0
    %228 = vmatpush1.msra.mxu0 0.0
    %229 = vmatprep.subr.mxu0 0.0
    %230 = vmatpush1.msra.mxu0 0.0
    %231 = vmatprep.subr.mxu0 0.0
    %232 = vmatpush1.msra.mxu0 0.0
    %233 = vmatprep.mubr.f32.mxu0 0.0
    %234 = vmatmul.mubr.f32.gmra.mrb[0].mxu0 %v164
    %v235 = vpop.f32.mrb[0].mxu0
    %v236 = vadd.f32 0.0, %v235
    %v237 = vpop.f32.mrb[0].mxu0
    %238 = vmatprep.mubr.f32.mxu0 0.0
    %239 = vmatmul.mubr.f32.gmra.mrb[0].mxu0 %v167
    %v240 = vpop.f32.mrb[0].mxu0
    %v241 = vadd.f32 0.0, %v240
    %v242 = vpop.f32.mrb[0].mxu0
    %243 = vdwg.mxu0
    %s244 = scalar_lea.vmem %s2, 160
    %v245 = vld [vmem:[%s244] sm:$0xff]
    %v246 = vld [vmem:[%s244 + $0x8] sm:$0xff]
    %v247 = vld [vmem:[%s244 + $0x10] sm:$0xff]
    %v248 = vld [vmem:[%s244 + $0x18] sm:$0xff]
    %v249 = vld [vmem:[%s244 + $0x20] sm:$0xff]
    %v250 = vld [vmem:[%s244 + $0x28] sm:$0xff]
    %v251 = vld [vmem:[%s244 + $0x30] sm:$0xff]
    %v252 = vld [vmem:[%s244 + $0x38] sm:$0xff]
    %v253 = vld [vmem:[%s244 + $0x40] sm:$0xff]
    %v254 = vld [vmem:[%s244 + $0x48] sm:$0xff]
    %v255 = vld [vmem:[%s244 + $0x50] sm:$0xff]
    %v256 = vld [vmem:[%s244 + $0x58] sm:$0xff]
    %v257 = vld [vmem:[%s244 + $0x60] sm:$0xff]
    %v258 = vld [vmem:[%s244 + $0x68] sm:$0xff]
    %v259 = vld [vmem:[%s244 + $0x70] sm:$0xff]
    %v260 = vld [vmem:[%s244 + $0x78] sm:$0xff]
    %v261 = vld [vmem:[%s244 + $0x80] sm:$0xff]
    %v262 = vld [vmem:[%s244 + $0x88] sm:$0xff]
    %v263 = vld [vmem:[%s244 + $0x90] sm:$0xff]
    %v264 = vld [vmem:[%s244 + $0x98] sm:$0xff]
    %vm265 = vcmask 654336
    %v267 = vsel %vm265, %v236, 0
    %v270 = vsel %vm265, %v241, 0
    %272 = vmatprep.subr.mxu0 %v246
    %273 = vmatpush1.msra.mxu0 %v245
    %274 = vmatprep.subr.mxu0 %v248
    %275 = vmatpush1.msra.mxu0 %v247
    %276 = vmatprep.subr.mxu0 %v250
    %277 = vmatpush1.msra.mxu0 %v249
    %278 = vmatprep.subr.mxu0 %v252
    %279 = vmatpush1.msra.mxu0 %v251
    %280 = vmatprep.subr.mxu0 %v254
    %281 = vmatpush1.msra.mxu0 %v253
    %282 = vmatprep.subr.mxu0 %v256
    %283 = vmatpush1.msra.mxu0 %v255
    %284 = vmatprep.subr.mxu0 %v258
    %285 = vmatpush1.msra.mxu0 %v257
    %286 = vmatprep.subr.mxu0 %v260
    %287 = vmatpush1.msra.mxu0 %v259
    %288 = vmatprep.subr.mxu0 %v262
    %289 = vmatpush1.msra.mxu0 %v261
    %290 = vmatprep.subr.mxu0 %v264
    %291 = vmatpush1.msra.mxu0 %v263
    %292 = vmatprep.subr.mxu0 0.0
    %293 = vmatpush1.msra.mxu0 0.0
    %294 = vmatprep.subr.mxu0 0.0
    %295 = vmatpush1.msra.mxu0 0.0
    %296 = vmatprep.subr.mxu0 0.0
    %297 = vmatpush1.msra.mxu0 0.0
    %298 = vmatprep.subr.mxu0 0.0
    %299 = vmatpush1.msra.mxu0 0.0
    %300 = vmatprep.subr.mxu0 0.0
    %301 = vmatpush1.msra.mxu0 0.0
    %302 = vmatprep.subr.mxu0 0.0
    %303 = vmatpush1.msra.mxu0 0.0
    %304 = vmatprep.subr.mxu0 0.0
    %305 = vmatpush1.msra.mxu0 0.0
    %306 = vmatprep.subr.mxu0 0.0
    %307 = vmatpush1.msra.mxu0 0.0
    %308 = vmatprep.subr.mxu0 0.0
    %309 = vmatpush1.msra.mxu0 0.0
    %310 = vmatprep.subr.mxu0 0.0
    %311 = vmatpush1.msra.mxu0 0.0
    %312 = vmatprep.subr.mxu0 0.0
    %313 = vmatpush1.msra.mxu0 0.0
    %314 = vmatprep.subr.mxu0 0.0
    %315 = vmatpush1.msra.mxu0 0.0
    %316 = vmatprep.subr.mxu0 0.0
    %317 = vmatpush1.msra.mxu0 0.0
    %318 = vmatprep.subr.mxu0 0.0
    %319 = vmatpush1.msra.mxu0 0.0
    %320 = vmatprep.subr.mxu0 0.0
    %321 = vmatpush1.msra.mxu0 0.0
    %322 = vmatprep.subr.mxu0 0.0
    %323 = vmatpush1.msra.mxu0 0.0
    %324 = vmatprep.subr.mxu0 0.0
    %325 = vmatpush1.msra.mxu0 0.0
    %326 = vmatprep.subr.mxu0 0.0
    %327 = vmatpush1.msra.mxu0 0.0
    %328 = vmatprep.subr.mxu0 0.0
    %329 = vmatpush1.msra.mxu0 0.0
    %330 = vmatprep.subr.mxu0 0.0
    %331 = vmatpush1.msra.mxu0 0.0
    %332 = vmatprep.subr.mxu0 0.0
    %333 = vmatpush1.msra.mxu0 0.0
    %334 = vmatprep.subr.mxu0 0.0
    %335 = vmatpush1.msra.mxu0 0.0
    %336 = vmatprep.mubr.f32.mxu0 0.0
    %337 = vmatmul.mubr.f32.gmra.mrb[0].mxu0 %v267
    %v338 = vpop.f32.mrb[0].mxu0
    %v339 = vadd.f32 0.0, %v338
    %v340 = vpop.f32.mrb[0].mxu0
    %v341 = vadd.f32 0.0, %v340
    %342 = vmatprep.mubr.f32.mxu0 0.0
    %343 = vmatmul.mubr.f32.gmra.mrb[0].mxu0 %v270
    %v344 = vpop.f32.mrb[0].mxu0
    %v345 = vadd.f32 0.0, %v344
    %v346 = vpop.f32.mrb[0].mxu0
    %v347 = vadd.f32 0.0, %v346
    %348 = vdwg.mxu0
    %v350 = vsel %vm265, %v132, 0
    %v353 = vsel %vm265, %v137, 0
    %355 = vmatprep.subr.mxu0 %v141
    %356 = vmatpush1.msra.mxu0 %v140
    %357 = vmatprep.subr.mxu0 %v143
    %358 = vmatpush1.msra.mxu0 %v142
    %359 = vmatprep.subr.mxu0 %v145
    %360 = vmatpush1.msra.mxu0 %v144
    %361 = vmatprep.subr.mxu0 %v147
    %362 = vmatpush1.msra.mxu0 %v146
    %363 = vmatprep.subr.mxu0 %v149
    %364 = vmatpush1.msra.mxu0 %v148
    %365 = vmatprep.subr.mxu0 %v151
    %366 = vmatpush1.msra.mxu0 %v150
    %367 = vmatprep.subr.mxu0 %v153
    %368 = vmatpush1.msra.mxu0 %v152
    %369 = vmatprep.subr.mxu0 %v155
    %370 = vmatpush1.msra.mxu0 %v154
    %371 = vmatprep.subr.mxu0 %v157
    %372 = vmatpush1.msra.mxu0 %v156
    %373 = vmatprep.subr.mxu0 %v159
    %374 = vmatpush1.msra.mxu0 %v158
    %375 = vmatprep.subr.mxu0 0.0
    %376 = vmatpush1.msra.mxu0 0.0
    %377 = vmatprep.subr.mxu0 0.0
    %378 = vmatpush1.msra.mxu0 0.0
    %379 = vmatprep.subr.mxu0 0.0
    %380 = vmatpush1.msra.mxu0 0.0
    %381 = vmatprep.subr.mxu0 0.0
    %382 = vmatpush1.msra.mxu0 0.0
    %383 = vmatprep.subr.mxu0 0.0
    %384 = vmatpush1.msra.mxu0 0.0
    %385 = vmatprep.subr.mxu0 0.0
    %386 = vmatpush1.msra.mxu0 0.0
    %387 = vmatprep.subr.mxu0 0.0
    %388 = vmatpush1.msra.mxu0 0.0
    %389 = vmatprep.subr.mxu0 0.0
    %390 = vmatpush1.msra.mxu0 0.0
    %391 = vmatprep.subr.mxu0 0.0
    %392 = vmatpush1.msra.mxu0 0.0
    %393 = vmatprep.subr.mxu0 0.0
    %394 = vmatpush1.msra.mxu0 0.0
    %395 = vmatprep.subr.mxu0 0.0
    %396 = vmatpush1.msra.mxu0 0.0
    %397 = vmatprep.subr.mxu0 0.0
    %398 = vmatpush1.msra.mxu0 0.0
    %399 = vmatprep.subr.mxu0 0.0
    %400 = vmatpush1.msra.mxu0 0.0
    %401 = vmatprep.subr.mxu0 0.0
    %402 = vmatpush1.msra.mxu0 0.0
    %403 = vmatprep.subr.mxu0 0.0
    %404 = vmatpush1.msra.mxu0 0.0
    %405 = vmatprep.subr.mxu0 0.0
    %406 = vmatpush1.msra.mxu0 0.0
    %407 = vmatprep.subr.mxu0 0.0
    %408 = vmatpush1.msra.mxu0 0.0
    %409 = vmatprep.subr.mxu0 0.0
    %410 = vmatpush1.msra.mxu0 0.0
    %411 = vmatprep.subr.mxu0 0.0
    %412 = vmatpush1.msra.mxu0 0.0
    %413 = vmatprep.subr.mxu0 0.0
    %414 = vmatpush1.msra.mxu0 0.0
    %415 = vmatprep.subr.mxu0 0.0
    %416 = vmatpush1.msra.mxu0 0.0
    %417 = vmatprep.subr.mxu0 0.0
    %418 = vmatpush1.msra.mxu0 0.0
    %419 = vmatprep.mubr.f32.mxu0 0.0
    %420 = vmatmul.mubr.f32.gmra.mrb[0].mxu0 %v350
    %v421 = vpop.f32.mrb[0].mxu0
    %v422 = vadd.f32 %v339, %v421
    %v423 = vpop.f32.mrb[0].mxu0
    %v424 = vadd.f32 %v341, %v423
    %425 = vmatprep.mubr.f32.mxu0 0.0
    %426 = vmatmul.mubr.f32.gmra.mrb[0].mxu0 %v353
    %v427 = vpop.f32.mrb[0].mxu0
    %v428 = vadd.f32 %v345, %v427
    %v429 = vpop.f32.mrb[0].mxu0
    %v430 = vadd.f32 %v347, %v429
    %431 = vdwg.mxu0
    %s432 = scalar_lea.vmem %s1, 32
    %v433 = vld [vmem:[%s432] sm:$0xff]
    %v434 = vld [vmem:[%s432 + $0x8] sm:$0x3]
    %v436 = vsel %vm54, %v433, 0
    %v439 = vsel %vm54, %v434, 0
    %441 = vmatprep.subr.mxu0 0.0
    %442 = vmatpush1.msra.mxu0 %v49
    %443 = vmatprep.subr.mxu0 0.0
    %444 = vmatpush1.msra.mxu0 %v50
    %445 = vmatprep.subr.mxu0 0.0
    %446 = vmatpush1.msra.mxu0 %v63
    %447 = vmatprep.subr.mxu0 0.0
    %448 = vmatpush1.msra.mxu0 0.0
    %449 = vmatprep.subr.mxu0 0.0
    %450 = vmatpush1.msra.mxu0 0.0
    %451 = vmatprep.subr.mxu0 0.0
    %452 = vmatpush1.msra.mxu0 0.0
    %453 = vmatprep.subr.mxu0 0.0
    %454 = vmatpush1.msra.mxu0 0.0
    %455 = vmatprep.subr.mxu0 0.0
    %456 = vmatpush1.msra.mxu0 0.0
    %457 = vmatprep.subr.mxu0 0.0
    %458 = vmatpush1.msra.mxu0 0.0
    %459 = vmatprep.subr.mxu0 0.0
    %460 = vmatpush1.msra.mxu0 0.0
    %461 = vmatprep.subr.mxu0 0.0
    %462 = vmatpush1.msra.mxu0 0.0
    %463 = vmatprep.subr.mxu0 0.0
    %464 = vmatpush1.msra.mxu0 0.0
    %465 = vmatprep.subr.mxu0 0.0
    %466 = vmatpush1.msra.mxu0 0.0
    %467 = vmatprep.subr.mxu0 0.0
    %468 = vmatpush1.msra.mxu0 0.0
    %469 = vmatprep.subr.mxu0 0.0
    %470 = vmatpush1.msra.mxu0 0.0
    %471 = vmatprep.subr.mxu0 0.0
    %472 = vmatpush1.msra.mxu0 0.0
    %473 = vmatprep.subr.mxu0 0.0
    %474 = vmatpush1.msra.mxu0 0.0
    %475 = vmatprep.subr.mxu0 0.0
    %476 = vmatpush1.msra.mxu0 0.0
    %477 = vmatprep.subr.mxu0 0.0
    %478 = vmatpush1.msra.mxu0 0.0
    %479 = vmatprep.subr.mxu0 0.0
    %480 = vmatpush1.msra.mxu0 0.0
    %481 = vmatprep.subr.mxu0 0.0
    %482 = vmatpush1.msra.mxu0 0.0
    %483 = vmatprep.subr.mxu0 0.0
    %484 = vmatpush1.msra.mxu0 0.0
    %485 = vmatprep.subr.mxu0 0.0
    %486 = vmatpush1.msra.mxu0 0.0
    %487 = vmatprep.subr.mxu0 0.0
    %488 = vmatpush1.msra.mxu0 0.0
    %489 = vmatprep.subr.mxu0 0.0
    %490 = vmatpush1.msra.mxu0 0.0
    %491 = vmatprep.subr.mxu0 0.0
    %492 = vmatpush1.msra.mxu0 0.0
    %493 = vmatprep.subr.mxu0 0.0
    %494 = vmatpush1.msra.mxu0 0.0
    %495 = vmatprep.subr.mxu0 0.0
    %496 = vmatpush1.msra.mxu0 0.0
    %497 = vmatprep.subr.mxu0 0.0
    %498 = vmatpush1.msra.mxu0 0.0
    %499 = vmatprep.subr.mxu0 0.0
    %500 = vmatpush1.msra.mxu0 0.0
    %501 = vmatprep.subr.mxu0 0.0
    %502 = vmatpush1.msra.mxu0 0.0
    %503 = vmatprep.subr.mxu0 0.0
    %504 = vmatpush1.msra.mxu0 0.0
    %505 = vmatprep.mubr.f32.mxu0 0.0
    %506 = vmatmul.mubr.f32.gmra.mrb[0].mxu0 %v436
    %v507 = vpop.f32.mrb[0].mxu0
    %v508 = vadd.f32 0.0, %v507
    %v509 = vpop.f32.mrb[0].mxu0
    %510 = vmatprep.mubr.f32.mxu0 0.0
    %511 = vmatmul.mubr.f32.gmra.mrb[0].mxu0 %v439
    %v512 = vpop.f32.mrb[0].mxu0
    %v513 = vadd.f32 0.0, %v512
    %v514 = vpop.f32.mrb[0].mxu0
    %515 = vdwg.mxu0
    %s516 = scalar_lea.vmem %s2, 320
    %v517 = vld [vmem:[%s516] sm:$0xff]
    %v518 = vld [vmem:[%s516 + $0x8] sm:$0xff]
    %v519 = vld [vmem:[%s516 + $0x10] sm:$0xff]
    %v520 = vld [vmem:[%s516 + $0x18] sm:$0xff]
    %v521 = vld [vmem:[%s516 + $0x20] sm:$0xff]
    %v522 = vld [vmem:[%s516 + $0x28] sm:$0xff]
    %v523 = vld [vmem:[%s516 + $0x30] sm:$0xff]
    %v524 = vld [vmem:[%s516 + $0x38] sm:$0xff]
    %v525 = vld [vmem:[%s516 + $0x40] sm:$0xff]
    %v526 = vld [vmem:[%s516 + $0x48] sm:$0xff]
    %v527 = vld [vmem:[%s516 + $0x50] sm:$0xff]
    %v528 = vld [vmem:[%s516 + $0x58] sm:$0xff]
    %v529 = vld [vmem:[%s516 + $0x60] sm:$0xff]
    %v530 = vld [vmem:[%s516 + $0x68] sm:$0xff]
    %v531 = vld [vmem:[%s516 + $0x70] sm:$0xff]
    %v532 = vld [vmem:[%s516 + $0x78] sm:$0xff]
    %v533 = vld [vmem:[%s516 + $0x80] sm:$0xff]
    %v534 = vld [vmem:[%s516 + $0x88] sm:$0xff]
    %v535 = vld [vmem:[%s516 + $0x90] sm:$0xff]
    %v536 = vld [vmem:[%s516 + $0x98] sm:$0xff]
    %v538 = vsel %vm265, %v508, 0
    %v541 = vsel %vm265, %v513, 0
    %543 = vmatprep.subr.mxu0 %v518
    %544 = vmatpush1.msra.mxu0 %v517
    %545 = vmatprep.subr.mxu0 %v520
    %546 = vmatpush1.msra.mxu0 %v519
    %547 = vmatprep.subr.mxu0 %v522
    %548 = vmatpush1.msra.mxu0 %v521
    %549 = vmatprep.subr.mxu0 %v524
    %550 = vmatpush1.msra.mxu0 %v523
    %551 = vmatprep.subr.mxu0 %v526
    %552 = vmatpush1.msra.mxu0 %v525
    %553 = vmatprep.subr.mxu0 %v528
    %554 = vmatpush1.msra.mxu0 %v527
    %555 = vmatprep.subr.mxu0 %v530
    %556 = vmatpush1.msra.mxu0 %v529
    %557 = vmatprep.subr.mxu0 %v532
    %558 = vmatpush1.msra.mxu0 %v531
    %559 = vmatprep.subr.mxu0 %v534
    %560 = vmatpush1.msra.mxu0 %v533
    %561 = vmatprep.subr.mxu0 %v536
    %562 = vmatpush1.msra.mxu0 %v535
    %563 = vmatprep.subr.mxu0 0.0
    %564 = vmatpush1.msra.mxu0 0.0
    %565 = vmatprep.subr.mxu0 0.0
    %566 = vmatpush1.msra.mxu0 0.0
    %567 = vmatprep.subr.mxu0 0.0
    %568 = vmatpush1.msra.mxu0 0.0
    %569 = vmatprep.subr.mxu0 0.0
    %570 = vmatpush1.msra.mxu0 0.0
    %571 = vmatprep.subr.mxu0 0.0
    %572 = vmatpush1.msra.mxu0 0.0
    %573 = vmatprep.subr.mxu0 0.0
    %574 = vmatpush1.msra.mxu0 0.0
    %575 = vmatprep.subr.mxu0 0.0
    %576 = vmatpush1.msra.mxu0 0.0
    %577 = vmatprep.subr.mxu0 0.0
    %578 = vmatpush1.msra.mxu0 0.0
    %579 = vmatprep.subr.mxu0 0.0
    %580 = vmatpush1.msra.mxu0 0.0
    %581 = vmatprep.subr.mxu0 0.0
    %582 = vmatpush1.msra.mxu0 0.0
    %583 = vmatprep.subr.mxu0 0.0
    %584 = vmatpush1.msra.mxu0 0.0
    %585 = vmatprep.subr.mxu0 0.0
    %586 = vmatpush1.msra.mxu0 0.0
    %587 = vmatprep.subr.mxu0 0.0
    %588 = vmatpush1.msra.mxu0 0.0
    %589 = vmatprep.subr.mxu0 0.0
    %590 = vmatpush1.msra.mxu0 0.0
    %591 = vmatprep.subr.mxu0 0.0
    %592 = vmatpush1.msra.mxu0 0.0
    %593 = vmatprep.subr.mxu0 0.0
    %594 = vmatpush1.msra.mxu0 0.0
    %595 = vmatprep.subr.mxu0 0.0
    %596 = vmatpush1.msra.mxu0 0.0
    %597 = vmatprep.subr.mxu0 0.0
    %598 = vmatpush1.msra.mxu0 0.0
    %599 = vmatprep.subr.mxu0 0.0
    %600 = vmatpush1.msra.mxu0 0.0
    %601 = vmatprep.subr.mxu0 0.0
    %602 = vmatpush1.msra.mxu0 0.0
    %603 = vmatprep.subr.mxu0 0.0
    %604 = vmatpush1.msra.mxu0 0.0
    %605 = vmatprep.subr.mxu0 0.0
    %606 = vmatpush1.msra.mxu0 0.0
    %607 = vmatprep.mubr.f32.mxu0 0.0
    %608 = vmatmul.mubr.f32.gmra.mrb[0].mxu0 %v538
    %v609 = vpop.f32.mrb[0].mxu0
    %v610 = vadd.f32 0.0, %v609
    %v611 = vpop.f32.mrb[0].mxu0
    %v612 = vadd.f32 0.0, %v611
    %613 = vmatprep.mubr.f32.mxu0 0.0
    %614 = vmatmul.mubr.f32.gmra.mrb[0].mxu0 %v541
    %v615 = vpop.f32.mrb[0].mxu0
    %v616 = vadd.f32 0.0, %v615
    %v617 = vpop.f32.mrb[0].mxu0
    %v618 = vadd.f32 0.0, %v617
    %619 = vdwg.mxu0
    %v620 = vadd.f32 %v422, %v610
    %v621 = vadd.f32 %v424, %v612
    %v622 = vadd.f32 %v428, %v616
    %v623 = vadd.f32 %v430, %v618
    %v624 = vld [vmem:[%s3] sm:$0x3]
    %v626 = vlaneseq
    %v627 = vshrl.u32 %v626, 7
    %v628 = vsub.s32 0, %v627
    %v629 = vrot.slane %v624, %v628
    %v630 = vlaneseq
    %v631 = vshrl.u32 %v630, 7
    %v632 = vsub.s32 1, %v631
    %v633 = vrot.slane %v624, %v632
    %v636 = vadd.f32 %v620, %v629
    %v637 = vadd.f32 %v621, %v633
    %v638 = vadd.f32 %v622, %v629
    %v639 = vadd.f32 %v623, %v633
    %v640 = vmax.f32 %v636, 0.0
    %v641 = vmax.f32 %v637, 0.0
    %v642 = vmax.f32 %v638, 0.0
    %v643 = vmax.f32 %v639, 0.0
    %v644 = vld [vmem:[%s4] sm:$0x1f]
    %vm645 = vcmask 80896
    %v647 = vsel %vm645, %v644, 0
    %vm649 = vcmask 1041408
    %v651 = vsel %vm649, %v642, 0
    %v654 = vsel %vm649, %v643, 0
    %656 = vmatprep.subr.mxu0 %v641
    %657 = vmatpush1.msra.mxu0 %v640
    %658 = vmatprep.subr.mxu0 %v654
    %659 = vmatpush1.msra.mxu0 %v651
    %660 = vmatprep.subr.mxu0 0.0
    %661 = vmatpush1.msra.mxu0 0.0
    %662 = vmatprep.subr.mxu0 0.0
    %663 = vmatpush1.msra.mxu0 0.0
    %664 = vmatprep.subr.mxu0 0.0
    %665 = vmatpush1.msra.mxu0 0.0
    %666 = vmatprep.subr.mxu0 0.0
    %667 = vmatpush1.msra.mxu0 0.0
    %668 = vmatprep.subr.mxu0 0.0
    %669 = vmatpush1.msra.mxu0 0.0
    %670 = vmatprep.subr.mxu0 0.0
    %671 = vmatpush1.msra.mxu0 0.0
    %672 = vmatprep.subr.mxu0 0.0
    %673 = vmatpush1.msra.mxu0 0.0
    %674 = vmatprep.subr.mxu0 0.0
    %675 = vmatpush1.msra.mxu0 0.0
    %676 = vmatprep.subr.mxu0 0.0
    %677 = vmatpush1.msra.mxu0 0.0
    %678 = vmatprep.subr.mxu0 0.0
    %679 = vmatpush1.msra.mxu0 0.0
    %680 = vmatprep.subr.mxu0 0.0
    %681 = vmatpush1.msra.mxu0 0.0
    %682 = vmatprep.subr.mxu0 0.0
    %683 = vmatpush1.msra.mxu0 0.0
    %684 = vmatprep.subr.mxu0 0.0
    %685 = vmatpush1.msra.mxu0 0.0
    %686 = vmatprep.subr.mxu0 0.0
    %687 = vmatpush1.msra.mxu0 0.0
    %688 = vmatprep.subr.mxu0 0.0
    %689 = vmatpush1.msra.mxu0 0.0
    %690 = vmatprep.subr.mxu0 0.0
    %691 = vmatpush1.msra.mxu0 0.0
    %692 = vmatprep.subr.mxu0 0.0
    %693 = vmatpush1.msra.mxu0 0.0
    %694 = vmatprep.subr.mxu0 0.0
    %695 = vmatpush1.msra.mxu0 0.0
    %696 = vmatprep.subr.mxu0 0.0
    %697 = vmatpush1.msra.mxu0 0.0
    %698 = vmatprep.subr.mxu0 0.0
    %699 = vmatpush1.msra.mxu0 0.0
    %700 = vmatprep.subr.mxu0 0.0
    %701 = vmatpush1.msra.mxu0 0.0
    %702 = vmatprep.subr.mxu0 0.0
    %703 = vmatpush1.msra.mxu0 0.0
    %704 = vmatprep.subr.mxu0 0.0
    %705 = vmatpush1.msra.mxu0 0.0
    %706 = vmatprep.subr.mxu0 0.0
    %707 = vmatpush1.msra.mxu0 0.0
    %708 = vmatprep.subr.mxu0 0.0
    %709 = vmatpush1.msra.mxu0 0.0
    %710 = vmatprep.subr.mxu0 0.0
    %711 = vmatpush1.msra.mxu0 0.0
    %712 = vmatprep.subr.mxu0 0.0
    %713 = vmatpush1.msra.mxu0 0.0
    %714 = vmatprep.subr.mxu0 0.0
    %715 = vmatpush1.msra.mxu0 0.0
    %716 = vmatprep.subr.mxu0 0.0
    %717 = vmatpush1.msra.mxu0 0.0
    %718 = vmatprep.subr.mxu0 0.0
    %719 = vmatpush1.msra.mxu0 0.0
    %720 = vmatprep.mubr.f32.mxu0 0.0
    %721 = vmatmul.mubr.f32.gmra.mrb[0].mxu0 %v647
    %v722 = vpop.f32.mrb[0].mxu0
    %v723 = vadd.f32 0.0, %v722
    %v724 = vpop.f32.mrb[0].mxu0
    %v725 = vadd.f32 0.0, %v724
    %726 = vdwg.mxu0
    %v727 = vld [vmem:[#allocation3] sm:$0xff]
    %v728 = vld [vmem:[#allocation3 + $0x8] sm:$0xff]
    %v729 = vld [vmem:[#allocation3 + $0x10] sm:$0xff]
    %v730 = vld [vmem:[#allocation3 + $0x18] sm:$0xff]
    %v731 = vld [vmem:[#allocation3 + $0x20] sm:$0xff]
    %v732 = vld [vmem:[#allocation3 + $0x28] sm:$0xff]
    %v733 = vld [vmem:[#allocation3 + $0x30] sm:$0xff]
    %v734 = vld [vmem:[#allocation3 + $0x38] sm:$0xff]
    %v735 = vld [vmem:[#allocation3 + $0x40] sm:$0xff]
    %v736 = vld [vmem:[#allocation3 + $0x48] sm:$0xff]
    %v737 = vld [vmem:[#allocation3 + $0x50] sm:$0xff]
    %v738 = vld [vmem:[#allocation3 + $0x58] sm:$0xff]
    %v739 = vld [vmem:[#allocation3 + $0x60] sm:$0xff]
    %v740 = vld [vmem:[#allocation3 + $0x68] sm:$0xff]
    %v741 = vld [vmem:[#allocation3 + $0x70] sm:$0xff]
    %v742 = vld [vmem:[#allocation3 + $0x78] sm:$0xff]
    %v743 = vld [vmem:[#allocation3 + $0x80] sm:$0xff]
    %v744 = vld [vmem:[#allocation3 + $0x88] sm:$0xff]
    %v745 = vld [vmem:[#allocation3 + $0x90] sm:$0xff]
    %v746 = vld [vmem:[#allocation3 + $0x98] sm:$0xff]
    %v747 = vld [vmem:[#allocation3 + $0xa0] sm:$0xff]
    %v748 = vld [vmem:[#allocation3 + $0xa8] sm:$0xff]
    %v749 = vld [vmem:[#allocation3 + $0xb0] sm:$0xff]
    %v750 = vld [vmem:[#allocation3 + $0xb8] sm:$0xff]
    %v751 = vld [vmem:[#allocation3 + $0xc0] sm:$0xff]
    %v752 = vld [vmem:[#allocation3 + $0xc8] sm:$0xff]
    %v753 = vld [vmem:[#allocation3 + $0xd0] sm:$0xff]
    %v754 = vld [vmem:[#allocation3 + $0xd8] sm:$0xff]
    %v755 = vld [vmem:[#allocation3 + $0xe0] sm:$0xff]
    %v756 = vld [vmem:[#allocation3 + $0xe8] sm:$0xff]
    %v757 = vld [vmem:[#allocation3 + $0xf0] sm:$0xff]
    %v758 = vld [vmem:[#allocation3 + $0xf8] sm:$0xff]
    %v759 = vld [vmem:[#allocation3 + $0x100] sm:$0xff]
    %v760 = vld [vmem:[#allocation3 + $0x108] sm:$0xff]
    %v761 = vld [vmem:[#allocation3 + $0x110] sm:$0xff]
    %v762 = vld [vmem:[#allocation3 + $0x118] sm:$0xff]
    %v763 = vld [vmem:[#allocation3 + $0x120] sm:$0xff]
    %v764 = vld [vmem:[#allocation3 + $0x128] sm:$0xff]
    %v765 = vld [vmem:[#allocation3 + $0x130] sm:$0xff]
    %v766 = vld [vmem:[#allocation3 + $0x138] sm:$0xff]
    %s767 = scalar_lea.vmem %s4, 8
    %v768 = vld [vmem:[%s767] sm:$0x1f]
    %v770 = vsel %vm645, %v768, 0
    %772 = vmatprep.subr.mxu0 %v641
    %773 = vmatpush1.msra.mxu0 %v640
    %774 = vmatprep.subr.mxu0 %v654
    %775 = vmatpush1.msra.mxu0 %v651
    %776 = vmatprep.subr.mxu0 0.0
    %777 = vmatpush1.msra.mxu0 0.0
    %778 = vmatprep.subr.mxu0 0.0
    %779 = vmatpush1.msra.mxu0 0.0
    %780 = vmatprep.subr.mxu0 0.0
    %781 = vmatpush1.msra.mxu0 0.0
    %782 = vmatprep.subr.mxu0 0.0
    %783 = vmatpush1.msra.mxu0 0.0
    %784 = vmatprep.subr.mxu0 0.0
    %785 = vmatpush1.msra.mxu0 0.0
    %786 = vmatprep.subr.mxu0 0.0
    %787 = vmatpush1.msra.mxu0 0.0
    %788 = vmatprep.subr.mxu0 0.0
    %789 = vmatpush1.msra.mxu0 0.0
    %790 = vmatprep.subr.mxu0 0.0
    %791 = vmatpush1.msra.mxu0 0.0
    %792 = vmatprep.subr.mxu0 0.0
    %793 = vmatpush1.msra.mxu0 0.0
    %794 = vmatprep.subr.mxu0 0.0
    %795 = vmatpush1.msra.mxu0 0.0
    %796 = vmatprep.subr.mxu0 0.0
    %797 = vmatpush1.msra.mxu0 0.0
    %798 = vmatprep.subr.mxu0 0.0
    %799 = vmatpush1.msra.mxu0 0.0
    %800 = vmatprep.subr.mxu0 0.0
    %801 = vmatpush1.msra.mxu0 0.0
    %802 = vmatprep.subr.mxu0 0.0
    %803 = vmatpush1.msra.mxu0 0.0
    %804 = vmatprep.subr.mxu0 0.0
    %805 = vmatpush1.msra.mxu0 0.0
    %806 = vmatprep.subr.mxu0 0.0
    %807 = vmatpush1.msra.mxu0 0.0
    %808 = vmatprep.subr.mxu0 0.0
    %809 = vmatpush1.msra.mxu0 0.0
    %810 = vmatprep.subr.mxu0 0.0
    %811 = vmatpush1.msra.mxu0 0.0
    %812 = vmatprep.subr.mxu0 0.0
    %813 = vmatpush1.msra.mxu0 0.0
    %814 = vmatprep.subr.mxu0 0.0
    %815 = vmatpush1.msra.mxu0 0.0
    %816 = vmatprep.subr.mxu0 0.0
    %817 = vmatpush1.msra.mxu0 0.0
    %818 = vmatprep.subr.mxu0 0.0
    %819 = vmatpush1.msra.mxu0 0.0
    %820 = vmatprep.subr.mxu0 0.0
    %821 = vmatpush1.msra.mxu0 0.0
    %822 = vmatprep.subr.mxu0 0.0
    %823 = vmatpush1.msra.mxu0 0.0
    %824 = vmatprep.subr.mxu0 0.0
    %825 = vmatpush1.msra.mxu0 0.0
    %826 = vmatprep.subr.mxu0 0.0
    %827 = vmatpush1.msra.mxu0 0.0
    %828 = vmatprep.subr.mxu0 0.0
    %829 = vmatpush1.msra.mxu0 0.0
    %830 = vmatprep.subr.mxu0 0.0
    %831 = vmatpush1.msra.mxu0 0.0
    %832 = vmatprep.subr.mxu0 0.0
    %833 = vmatpush1.msra.mxu0 0.0
    %834 = vmatprep.subr.mxu0 0.0
    %835 = vmatpush1.msra.mxu0 0.0
    %836 = vmatprep.mubr.f32.mxu0 0.0
    %837 = vmatmul.mubr.f32.gmra.mrb[0].mxu0 %v770
    %v838 = vpop.f32.mrb[0].mxu0
    %v839 = vadd.f32 0.0, %v838
    %v840 = vpop.f32.mrb[0].mxu0
    %v841 = vadd.f32 0.0, %v840
    %842 = vdwg.mxu0
    %s843 = scalar_lea.vmem [#allocation3], 320
    %v844 = vld [vmem:[%s843] sm:$0xff]
    %v845 = vld [vmem:[%s843 + $0x8] sm:$0xff]
    %v846 = vld [vmem:[%s843 + $0x10] sm:$0xff]
    %v847 = vld [vmem:[%s843 + $0x18] sm:$0xff]
    %v848 = vld [vmem:[%s843 + $0x20] sm:$0xff]
    %v849 = vld [vmem:[%s843 + $0x28] sm:$0xff]
    %v850 = vld [vmem:[%s843 + $0x30] sm:$0xff]
    %v851 = vld [vmem:[%s843 + $0x38] sm:$0xff]
    %v852 = vld [vmem:[%s843 + $0x40] sm:$0xff]
    %v853 = vld [vmem:[%s843 + $0x48] sm:$0xff]
    %v854 = vld [vmem:[%s843 + $0x50] sm:$0xff]
    %v855 = vld [vmem:[%s843 + $0x58] sm:$0xff]
    %v856 = vld [vmem:[%s843 + $0x60] sm:$0xff]
    %v857 = vld [vmem:[%s843 + $0x68] sm:$0xff]
    %v858 = vld [vmem:[%s843 + $0x70] sm:$0xff]
    %v859 = vld [vmem:[%s843 + $0x78] sm:$0xff]
    %v860 = vld [vmem:[%s843 + $0x80] sm:$0xff]
    %v861 = vld [vmem:[%s843 + $0x88] sm:$0xff]
    %v862 = vld [vmem:[%s843 + $0x90] sm:$0xff]
    %v863 = vld [vmem:[%s843 + $0x98] sm:$0xff]
    %v864 = vld [vmem:[%s843 + $0xa0] sm:$0xff]
    %v865 = vld [vmem:[%s843 + $0xa8] sm:$0xff]
    %v866 = vld [vmem:[%s843 + $0xb0] sm:$0xff]
    %v867 = vld [vmem:[%s843 + $0xb8] sm:$0xff]
    %v868 = vld [vmem:[%s843 + $0xc0] sm:$0xff]
    %v869 = vld [vmem:[%s843 + $0xc8] sm:$0xff]
    %v870 = vld [vmem:[%s843 + $0xd0] sm:$0xff]
    %v871 = vld [vmem:[%s843 + $0xd8] sm:$0xff]
    %v872 = vld [vmem:[%s843 + $0xe0] sm:$0xff]
    %v873 = vld [vmem:[%s843 + $0xe8] sm:$0xff]
    %v874 = vld [vmem:[%s843 + $0xf0] sm:$0xff]
    %v875 = vld [vmem:[%s843 + $0xf8] sm:$0xff]
    %v876 = vld [vmem:[%s843 + $0x100] sm:$0xff]
    %v877 = vld [vmem:[%s843 + $0x108] sm:$0xff]
    %v878 = vld [vmem:[%s843 + $0x110] sm:$0xff]
    %v879 = vld [vmem:[%s843 + $0x118] sm:$0xff]
    %v880 = vld [vmem:[%s843 + $0x120] sm:$0xff]
    %v881 = vld [vmem:[%s843 + $0x128] sm:$0xff]
    %v882 = vld [vmem:[%s843 + $0x130] sm:$0xff]
    %v883 = vld [vmem:[%s843 + $0x138] sm:$0xff]
    %vm884 = vcmask 261120
    %v886 = vsel %vm884, %v841, 0
    %888 = vmatprep.subr.mxu0 %v845
    %889 = vmatpush1.msra.mxu0 %v844
    %890 = vmatprep.subr.mxu0 %v847
    %891 = vmatpush1.msra.mxu0 %v846
    %892 = vmatprep.subr.mxu0 %v849
    %893 = vmatpush1.msra.mxu0 %v848
    %894 = vmatprep.subr.mxu0 %v851
    %895 = vmatpush1.msra.mxu0 %v850
    %896 = vmatprep.subr.mxu0 %v853
    %897 = vmatpush1.msra.mxu0 %v852
    %898 = vmatprep.subr.mxu0 %v855
    %899 = vmatpush1.msra.mxu0 %v854
    %900 = vmatprep.subr.mxu0 %v857
    %901 = vmatpush1.msra.mxu0 %v856
    %902 = vmatprep.subr.mxu0 %v859
    %903 = vmatpush1.msra.mxu0 %v858
    %904 = vmatprep.subr.mxu0 %v861
    %905 = vmatpush1.msra.mxu0 %v860
    %906 = vmatprep.subr.mxu0 %v863
    %907 = vmatpush1.msra.mxu0 %v862
    %908 = vmatprep.subr.mxu0 %v865
    %909 = vmatpush1.msra.mxu0 %v864
    %910 = vmatprep.subr.mxu0 %v867
    %911 = vmatpush1.msra.mxu0 %v866
    %912 = vmatprep.subr.mxu0 %v869
    %913 = vmatpush1.msra.mxu0 %v868
    %914 = vmatprep.subr.mxu0 %v871
    %915 = vmatpush1.msra.mxu0 %v870
    %916 = vmatprep.subr.mxu0 %v873
    %917 = vmatpush1.msra.mxu0 %v872
    %918 = vmatprep.subr.mxu0 %v875
    %919 = vmatpush1.msra.mxu0 %v874
    %920 = vmatprep.subr.mxu0 %v877
    %921 = vmatpush1.msra.mxu0 %v876
    %922 = vmatprep.subr.mxu0 %v879
    %923 = vmatpush1.msra.mxu0 %v878
    %924 = vmatprep.subr.mxu0 %v881
    %925 = vmatpush1.msra.mxu0 %v880
    %926 = vmatprep.subr.mxu0 %v883
    %927 = vmatpush1.msra.mxu0 %v882
    %928 = vmatprep.subr.mxu0 0.0
    %929 = vmatpush1.msra.mxu0 0.0
    %930 = vmatprep.subr.mxu0 0.0
    %931 = vmatpush1.msra.mxu0 0.0
    %932 = vmatprep.subr.mxu0 0.0
    %933 = vmatpush1.msra.mxu0 0.0
    %934 = vmatprep.subr.mxu0 0.0
    %935 = vmatpush1.msra.mxu0 0.0
    %936 = vmatprep.subr.mxu0 0.0
    %937 = vmatpush1.msra.mxu0 0.0
    %938 = vmatprep.subr.mxu0 0.0
    %939 = vmatpush1.msra.mxu0 0.0
    %940 = vmatprep.subr.mxu0 0.0
    %941 = vmatpush1.msra.mxu0 0.0
    %942 = vmatprep.subr.mxu0 0.0
    %943 = vmatpush1.msra.mxu0 0.0
    %944 = vmatprep.subr.mxu0 0.0
    %945 = vmatpush1.msra.mxu0 0.0
    %946 = vmatprep.subr.mxu0 0.0
    %947 = vmatpush1.msra.mxu0 0.0
    %948 = vmatprep.subr.mxu0 0.0
    %949 = vmatpush1.msra.mxu0 0.0
    %950 = vmatprep.subr.mxu0 0.0
    %951 = vmatpush1.msra.mxu0 0.0
    %952 = vmatprep.mubr.f32.mxu0 %v886
    %953 = vmatmul.mubr.f32.gmra.mrb[0].mxu0 %v839
    %v954 = vpop.f32.mrb[0].mxu0
    %v955 = vadd.f32 0.0, %v954
    %v956 = vpop.f32.mrb[0].mxu0
    %v957 = vadd.f32 0.0, %v956
    %958 = vdwg.mxu0
    %v960 = vsel %vm884, %v725, 0
    %962 = vmatprep.subr.mxu0 %v728
    %963 = vmatpush1.msra.mxu0 %v727
    %964 = vmatprep.subr.mxu0 %v730
    %965 = vmatpush1.msra.mxu0 %v729
    %966 = vmatprep.subr.mxu0 %v732
    %967 = vmatpush1.msra.mxu0 %v731
    %968 = vmatprep.subr.mxu0 %v734
    %969 = vmatpush1.msra.mxu0 %v733
    %970 = vmatprep.subr.mxu0 %v736
    %971 = vmatpush1.msra.mxu0 %v735
    %972 = vmatprep.subr.mxu0 %v738
    %973 = vmatpush1.msra.mxu0 %v737
    %974 = vmatprep.subr.mxu0 %v740
    %975 = vmatpush1.msra.mxu0 %v739
    %976 = vmatprep.subr.mxu0 %v742
    %977 = vmatpush1.msra.mxu0 %v741
    %978 = vmatprep.subr.mxu0 %v744
    %979 = vmatpush1.msra.mxu0 %v743
    %980 = vmatprep.subr.mxu0 %v746
    %981 = vmatpush1.msra.mxu0 %v745
    %982 = vmatprep.subr.mxu0 %v748
    %983 = vmatpush1.msra.mxu0 %v747
    %984 = vmatprep.subr.mxu0 %v750
    %985 = vmatpush1.msra.mxu0 %v749
    %986 = vmatprep.subr.mxu0 %v752
    %987 = vmatpush1.msra.mxu0 %v751
    %988 = vmatprep.subr.mxu0 %v754
    %989 = vmatpush1.msra.mxu0 %v753
    %990 = vmatprep.subr.mxu0 %v756
    %991 = vmatpush1.msra.mxu0 %v755
    %992 = vmatprep.subr.mxu0 %v758
    %993 = vmatpush1.msra.mxu0 %v757
    %994 = vmatprep.subr.mxu0 %v760
    %995 = vmatpush1.msra.mxu0 %v759
    %996 = vmatprep.subr.mxu0 %v762
    %997 = vmatpush1.msra.mxu0 %v761
    %998 = vmatprep.subr.mxu0 %v764
    %999 = vmatpush1.msra.mxu0 %v763
    %1000 = vmatprep.subr.mxu0 %v766
    %1001 = vmatpush1.msra.mxu0 %v765
    %1002 = vmatprep.subr.mxu0 0.0
    %1003 = vmatpush1.msra.mxu0 0.0
    %1004 = vmatprep.subr.mxu0 0.0
    %1005 = vmatpush1.msra.mxu0 0.0
    %1006 = vmatprep.subr.mxu0 0.0
    %1007 = vmatpush1.msra.mxu0 0.0
    %1008 = vmatprep.subr.mxu0 0.0
    %1009 = vmatpush1.msra.mxu0 0.0
    %1010 = vmatprep.subr.mxu0 0.0
    %1011 = vmatpush1.msra.mxu0 0.0
    %1012 = vmatprep.subr.mxu0 0.0
    %1013 = vmatpush1.msra.mxu0 0.0
    %1014 = vmatprep.subr.mxu0 0.0
    %1015 = vmatpush1.msra.mxu0 0.0
    %1016 = vmatprep.subr.mxu0 0.0
    %1017 = vmatpush1.msra.mxu0 0.0
    %1018 = vmatprep.subr.mxu0 0.0
    %1019 = vmatpush1.msra.mxu0 0.0
    %1020 = vmatprep.subr.mxu0 0.0
    %1021 = vmatpush1.msra.mxu0 0.0
    %1022 = vmatprep.subr.mxu0 0.0
    %1023 = vmatpush1.msra.mxu0 0.0
    %1024 = vmatprep.subr.mxu0 0.0
    %1025 = vmatpush1.msra.mxu0 0.0
    %1026 = vmatprep.mubr.f32.mxu0 %v960
    %1027 = vmatmul.mubr.f32.gmra.mrb[0].mxu0 %v723
    %v1028 = vpop.f32.mrb[0].mxu0
    %v1029 = vadd.f32 %v955, %v1028
    %v1030 = vpop.f32.mrb[0].mxu0
    %v1031 = vadd.f32 %v957, %v1030
    %1032 = vdwg.mxu0
    %s1033 = scalar_lea.vmem %s4, 16
    %v1034 = vld [vmem:[%s1033] sm:$0x1f]
    %v1036 = vsel %vm645, %v1034, 0
    %1038 = vmatprep.subr.mxu0 %v641
    %1039 = vmatpush1.msra.mxu0 %v640
    %1040 = vmatprep.subr.mxu0 %v654
    %1041 = vmatpush1.msra.mxu0 %v651
    %1042 = vmatprep.subr.mxu0 0.0
    %1043 = vmatpush1.msra.mxu0 0.0
    %1044 = vmatprep.subr.mxu0 0.0
    %1045 = vmatpush1.msra.mxu0 0.0
    %1046 = vmatprep.subr.mxu0 0.0
    %1047 = vmatpush1.msra.mxu0 0.0
    %1048 = vmatprep.subr.mxu0 0.0
    %1049 = vmatpush1.msra.mxu0 0.0
    %1050 = vmatprep.subr.mxu0 0.0
    %1051 = vmatpush1.msra.mxu0 0.0
    %1052 = vmatprep.subr.mxu0 0.0
    %1053 = vmatpush1.msra.mxu0 0.0
    %1054 = vmatprep.subr.mxu0 0.0
    %1055 = vmatpush1.msra.mxu0 0.0
    %1056 = vmatprep.subr.mxu0 0.0
    %1057 = vmatpush1.msra.mxu0 0.0
    %1058 = vmatprep.subr.mxu0 0.0
    %1059 = vmatpush1.msra.mxu0 0.0
    %1060 = vmatprep.subr.mxu0 0.0
    %1061 = vmatpush1.msra.mxu0 0.0
    %1062 = vmatprep.subr.mxu0 0.0
    %1063 = vmatpush1.msra.mxu0 0.0
    %1064 = vmatprep.subr.mxu0 0.0
    %1065 = vmatpush1.msra.mxu0 0.0
    %1066 = vmatprep.subr.mxu0 0.0
    %1067 = vmatpush1.msra.mxu0 0.0
    %1068 = vmatprep.subr.mxu0 0.0
    %1069 = vmatpush1.msra.mxu0 0.0
    %1070 = vmatprep.subr.mxu0 0.0
    %1071 = vmatpush1.msra.mxu0 0.0
    %1072 = vmatprep.subr.mxu0 0.0
    %1073 = vmatpush1.msra.mxu0 0.0
    %1074 = vmatprep.subr.mxu0 0.0
    %1075 = vmatpush1.msra.mxu0 0.0
    %1076 = vmatprep.subr.mxu0 0.0
    %1077 = vmatpush1.msra.mxu0 0.0
    %1078 = vmatprep.subr.mxu0 0.0
    %1079 = vmatpush1.msra.mxu0 0.0
    %1080 = vmatprep.subr.mxu0 0.0
    %1081 = vmatpush1.msra.mxu0 0.0
    %1082 = vmatprep.subr.mxu0 0.0
    %1083 = vmatpush1.msra.mxu0 0.0
    %1084 = vmatprep.subr.mxu0 0.0
    %1085 = vmatpush1.msra.mxu0 0.0
    %1086 = vmatprep.subr.mxu0 0.0
    %1087 = vmatpush1.msra.mxu0 0.0
    %1088 = vmatprep.subr.mxu0 0.0
    %1089 = vmatpush1.msra.mxu0 0.0
    %1090 = vmatprep.subr.mxu0 0.0
    %1091 = vmatpush1.msra.mxu0 0.0
    %1092 = vmatprep.subr.mxu0 0.0
    %1093 = vmatpush1.msra.mxu0 0.0
    %1094 = vmatprep.subr.mxu0 0.0
    %1095 = vmatpush1.msra.mxu0 0.0
    %1096 = vmatprep.subr.mxu0 0.0
    %1097 = vmatpush1.msra.mxu0 0.0
    %1098 = vmatprep.subr.mxu0 0.0
    %1099 = vmatpush1.msra.mxu0 0.0
    %1100 = vmatprep.subr.mxu0 0.0
    %1101 = vmatpush1.msra.mxu0 0.0
    %1102 = vmatprep.mubr.f32.mxu0 0.0
    %1103 = vmatmul.mubr.f32.gmra.mrb[0].mxu0 %v1036
    %v1104 = vpop.f32.mrb[0].mxu0
    %v1105 = vadd.f32 0.0, %v1104
    %v1106 = vpop.f32.mrb[0].mxu0
    %v1107 = vadd.f32 0.0, %v1106
    %1108 = vdwg.mxu0
    %s1109 = scalar_lea.vmem [#allocation3], 640
    %v1110 = vld [vmem:[%s1109] sm:$0xff]
    %v1111 = vld [vmem:[%s1109 + $0x8] sm:$0xff]
    %v1112 = vld [vmem:[%s1109 + $0x10] sm:$0xff]
    %v1113 = vld [vmem:[%s1109 + $0x18] sm:$0xff]
    %v1114 = vld [vmem:[%s1109 + $0x20] sm:$0xff]
    %v1115 = vld [vmem:[%s1109 + $0x28] sm:$0xff]
    %v1116 = vld [vmem:[%s1109 + $0x30] sm:$0xff]
    %v1117 = vld [vmem:[%s1109 + $0x38] sm:$0xff]
    %v1118 = vld [vmem:[%s1109 + $0x40] sm:$0xff]
    %v1119 = vld [vmem:[%s1109 + $0x48] sm:$0xff]
    %v1120 = vld [vmem:[%s1109 + $0x50] sm:$0xff]
    %v1121 = vld [vmem:[%s1109 + $0x58] sm:$0xff]
    %v1122 = vld [vmem:[%s1109 + $0x60] sm:$0xff]
    %v1123 = vld [vmem:[%s1109 + $0x68] sm:$0xff]
    %v1124 = vld [vmem:[%s1109 + $0x70] sm:$0xff]
    %v1125 = vld [vmem:[%s1109 + $0x78] sm:$0xff]
    %v1126 = vld [vmem:[%s1109 + $0x80] sm:$0xff]
    %v1127 = vld [vmem:[%s1109 + $0x88] sm:$0xff]
    %v1128 = vld [vmem:[%s1109 + $0x90] sm:$0xff]
    %v1129 = vld [vmem:[%s1109 + $0x98] sm:$0xff]
    %v1130 = vld [vmem:[%s1109 + $0xa0] sm:$0xff]
    %v1131 = vld [vmem:[%s1109 + $0xa8] sm:$0xff]
    %v1132 = vld [vmem:[%s1109 + $0xb0] sm:$0xff]
    %v1133 = vld [vmem:[%s1109 + $0xb8] sm:$0xff]
    %v1134 = vld [vmem:[%s1109 + $0xc0] sm:$0xff]
    %v1135 = vld [vmem:[%s1109 + $0xc8] sm:$0xff]
    %v1136 = vld [vmem:[%s1109 + $0xd0] sm:$0xff]
    %v1137 = vld [vmem:[%s1109 + $0xd8] sm:$0xff]
    %v1138 = vld [vmem:[%s1109 + $0xe0] sm:$0xff]
    %v1139 = vld [vmem:[%s1109 + $0xe8] sm:$0xff]
    %v1140 = vld [vmem:[%s1109 + $0xf0] sm:$0xff]
    %v1141 = vld [vmem:[%s1109 + $0xf8] sm:$0xff]
    %v1142 = vld [vmem:[%s1109 + $0x100] sm:$0xff]
    %v1143 = vld [vmem:[%s1109 + $0x108] sm:$0xff]
    %v1144 = vld [vmem:[%s1109 + $0x110] sm:$0xff]
    %v1145 = vld [vmem:[%s1109 + $0x118] sm:$0xff]
    %v1146 = vld [vmem:[%s1109 + $0x120] sm:$0xff]
    %v1147 = vld [vmem:[%s1109 + $0x128] sm:$0xff]
    %v1148 = vld [vmem:[%s1109 + $0x130] sm:$0xff]
    %v1149 = vld [vmem:[%s1109 + $0x138] sm:$0xff]
    %v1151 = vsel %vm884, %v1107, 0
    %1153 = vmatprep.subr.mxu0 %v1111
    %1154 = vmatpush1.msra.mxu0 %v1110
    %1155 = vmatprep.subr.mxu0 %v1113
    %1156 = vmatpush1.msra.mxu0 %v1112
    %1157 = vmatprep.subr.mxu0 %v1115
    %1158 = vmatpush1.msra.mxu0 %v1114
    %1159 = vmatprep.subr.mxu0 %v1117
    %1160 = vmatpush1.msra.mxu0 %v1116
    %1161 = vmatprep.subr.mxu0 %v1119
    %1162 = vmatpush1.msra.mxu0 %v1118
    %1163 = vmatprep.subr.mxu0 %v1121
    %1164 = vmatpush1.msra.mxu0 %v1120
    %1165 = vmatprep.subr.mxu0 %v1123
    %1166 = vmatpush1.msra.mxu0 %v1122
    %1167 = vmatprep.subr.mxu0 %v1125
    %1168 = vmatpush1.msra.mxu0 %v1124
    %1169 = vmatprep.subr.mxu0 %v1127
    %1170 = vmatpush1.msra.mxu0 %v1126
    %1171 = vmatprep.subr.mxu0 %v1129
    %1172 = vmatpush1.msra.mxu0 %v1128
    %1173 = vmatprep.subr.mxu0 %v1131
    %1174 = vmatpush1.msra.mxu0 %v1130
    %1175 = vmatprep.subr.mxu0 %v1133
    %1176 = vmatpush1.msra.mxu0 %v1132
    %1177 = vmatprep.subr.mxu0 %v1135
    %1178 = vmatpush1.msra.mxu0 %v1134
    %1179 = vmatprep.subr.mxu0 %v1137
    %1180 = vmatpush1.msra.mxu0 %v1136
    %1181 = vmatprep.subr.mxu0 %v1139
    %1182 = vmatpush1.msra.mxu0 %v1138
    %1183 = vmatprep.subr.mxu0 %v1141
    %1184 = vmatpush1.msra.mxu0 %v1140
    %1185 = vmatprep.subr.mxu0 %v1143
    %1186 = vmatpush1.msra.mxu0 %v1142
    %1187 = vmatprep.subr.mxu0 %v1145
    %1188 = vmatpush1.msra.mxu0 %v1144
    %1189 = vmatprep.subr.mxu0 %v1147
    %1190 = vmatpush1.msra.mxu0 %v1146
    %1191 = vmatprep.subr.mxu0 %v1149
    %1192 = vmatpush1.msra.mxu0 %v1148
    %1193 = vmatprep.subr.mxu0 0.0
    %1194 = vmatpush1.msra.mxu0 0.0
    %1195 = vmatprep.subr.mxu0 0.0
    %1196 = vmatpush1.msra.mxu0 0.0
    %1197 = vmatprep.subr.mxu0 0.0
    %1198 = vmatpush1.msra.mxu0 0.0
    %1199 = vmatprep.subr.mxu0 0.0
    %1200 = vmatpush1.msra.mxu0 0.0
    %1201 = vmatprep.subr.mxu0 0.0
    %1202 = vmatpush1.msra.mxu0 0.0
    %1203 = vmatprep.subr.mxu0 0.0
    %1204 = vmatpush1.msra.mxu0 0.0
    %1205 = vmatprep.subr.mxu0 0.0
    %1206 = vmatpush1.msra.mxu0 0.0
    %1207 = vmatprep.subr.mxu0 0.0
    %1208 = vmatpush1.msra.mxu0 0.0
    %1209 = vmatprep.subr.mxu0 0.0
    %1210 = vmatpush1.msra.mxu0 0.0
    %1211 = vmatprep.subr.mxu0 0.0
    %1212 = vmatpush1.msra.mxu0 0.0
    %1213 = vmatprep.subr.mxu0 0.0
    %1214 = vmatpush1.msra.mxu0 0.0
    %1215 = vmatprep.subr.mxu0 0.0
    %1216 = vmatpush1.msra.mxu0 0.0
    %1217 = vmatprep.mubr.f32.mxu0 %v1151
    %1218 = vmatmul.mubr.f32.gmra.mrb[0].mxu0 %v1105
    %v1219 = vpop.f32.mrb[0].mxu0
    %v1220 = vadd.f32 0.0, %v1219
    %v1221 = vpop.f32.mrb[0].mxu0
    %v1222 = vadd.f32 0.0, %v1221
    %1223 = vdwg.mxu0
    %v1224 = vadd.f32 %v1029, %v1220
    %v1225 = vadd.f32 %v1031, %v1222
    %v1226 = vld [vmem:[%s6] sm:$0x3]
    %v1228 = vlaneseq
    %v1229 = vshrl.u32 %v1228, 7
    %v1230 = vsub.s32 0, %v1229
    %v1231 = vrot.slane %v1226, %v1230
    %v1232 = vlaneseq
    %v1233 = vshrl.u32 %v1232, 7
    %v1234 = vsub.s32 1, %v1233
    %v1235 = vrot.slane %v1226, %v1234
    %v1238 = vadd.f32 %v1224, %v1231
    %v1239 = vadd.f32 %v1225, %v1235
    %v1240 = vmax.f32 %v1238, 0.0
    %v1241 = vmax.f32 %v1239, 0.0
    %v1242 = vld [vmem:[%s7] sm:$0x1f]
    %v1243 = vld [vmem:[%s7 + $0x8] sm:$0x1f]
    %v1244 = vmul.f32 %v1240, %v1242
    %v1245 = vmul.f32 %v1241, %v1243
    %vm1246 = vcmask 1044480
    %v1247 = vsel %vm1246, %v1244, 0.0
    %vm1248 = vcmask 258048
    %v1249 = vsel %vm1248, %v1245, 0.0
    %v1250 = vadd.f32 %v1247, %v1249
    %1251 = vadd.xlane.f32.xlu0 %v1250
    %v1252 = vpop.xlane.xlu0 %1251
    %v1253 = vsel %vm1246, %v1252, 0.0
    %v1254 = vrot.slane %v1253, 4
    %v1255 = vadd.f32 %v1253, %v1254
    %v1256 = vrot.slane %v1255, 2
    %v1257 = vadd.f32 %v1255, %v1256
    %v1258 = vrot.slane %v1257, 1
    %v1259 = vadd.f32 %v1257, %v1258
    %v1260 = vld [vmem:[#allocation2] sm:$0x1]
    %v1261 = vadd.f32 %v1259, %v1260
    %vm1262 = vcmask 0
    %1263 = vst.msk [vmem:[#allocation6] sm:$0x1] %vm1262, %v1261
    %s1264 = scalar_lea.vmem %s0, 24
    %v1265 = vld [vmem:[%s1264] sm:$0xff]
    %v1266 = vld [vmem:[%s1264 + $0x8] sm:$0xff]
    %v1267 = vld [vmem:[%s1264 + $0x10] sm:$0xf]
    %v1268 = vld [vmem:[%s1] sm:$0xff]
    %v1269 = vld [vmem:[%s1 + $0x8] sm:$0x3]
    %v1271 = vsel %vm54, %v1268, 0
    %v1274 = vsel %vm54, %v1269, 0
    %v1277 = vsel %vm61, %v1267, 0
    %1279 = vmatprep.subr.mxu0 0.0
    %1280 = vmatpush1.msra.mxu0 %v1265
    %1281 = vmatprep.subr.mxu0 0.0
    %1282 = vmatpush1.msra.mxu0 %v1266
    %1283 = vmatprep.subr.mxu0 0.0
    %1284 = vmatpush1.msra.mxu0 %v1277
    %1285 = vmatprep.subr.mxu0 0.0
    %1286 = vmatpush1.msra.mxu0 0.0
    %1287 = vmatprep.subr.mxu0 0.0
    %1288 = vmatpush1.msra.mxu0 0.0
    %1289 = vmatprep.subr.mxu0 0.0
    %1290 = vmatpush1.msra.mxu0 0.0
    %1291 = vmatprep.subr.mxu0 0.0
    %1292 = vmatpush1.msra.mxu0 0.0
    %1293 = vmatprep.subr.mxu0 0.0
    %1294 = vmatpush1.msra.mxu0 0.0
    %1295 = vmatprep.subr.mxu0 0.0
    %1296 = vmatpush1.msra.mxu0 0.0
    %1297 = vmatprep.subr.mxu0 0.0
    %1298 = vmatpush1.msra.mxu0 0.0
    %1299 = vmatprep.subr.mxu0 0.0
    %1300 = vmatpush1.msra.mxu0 0.0
    %1301 = vmatprep.subr.mxu0 0.0
    %1302 = vmatpush1.msra.mxu0 0.0
    %1303 = vmatprep.subr.mxu0 0.0
    %1304 = vmatpush1.msra.mxu0 0.0
    %1305 = vmatprep.subr.mxu0 0.0
    %1306 = vmatpush1.msra.mxu0 0.0
    %1307 = vmatprep.subr.mxu0 0.0
    %1308 = vmatpush1.msra.mxu0 0.0
    %1309 = vmatprep.subr.mxu0 0.0
    %1310 = vmatpush1.msra.mxu0 0.0
    %1311 = vmatprep.subr.mxu0 0.0
    %1312 = vmatpush1.msra.mxu0 0.0
    %1313 = vmatprep.subr.mxu0 0.0
    %1314 = vmatpush1.msra.mxu0 0.0
    %1315 = vmatprep.subr.mxu0 0.0
    %1316 = vmatpush1.msra.mxu0 0.0
    %1317 = vmatprep.subr.mxu0 0.0
    %1318 = vmatpush1.msra.mxu0 0.0
    %1319 = vmatprep.subr.mxu0 0.0
    %1320 = vmatpush1.msra.mxu0 0.0
    %1321 = vmatprep.subr.mxu0 0.0
    %1322 = vmatpush1.msra.mxu0 0.0
    %1323 = vmatprep.subr.mxu0 0.0
    %1324 = vmatpush1.msra.mxu0 0.0
    %1325 = vmatprep.subr.mxu0 0.0
    %1326 = vmatpush1.msra.mxu0 0.0
    %1327 = vmatprep.subr.mxu0 0.0
    %1328 = vmatpush1.msra.mxu0 0.0
    %1329 = vmatprep.subr.mxu0 0.0
    %1330 = vmatpush1.msra.mxu0 0.0
    %1331 = vmatprep.subr.mxu0 0.0
    %1332 = vmatpush1.msra.mxu0 0.0
    %1333 = vmatprep.subr.mxu0 0.0
    %1334 = vmatpush1.msra.mxu0 0.0
    %1335 = vmatprep.subr.mxu0 0.0
    %1336 = vmatpush1.msra.mxu0 0.0
    %1337 = vmatprep.subr.mxu0 0.0
    %1338 = vmatpush1.msra.mxu0 0.0
    %1339 = vmatprep.subr.mxu0 0.0
    %1340 = vmatpush1.msra.mxu0 0.0
    %1341 = vmatprep.subr.mxu0 0.0
    %1342 = vmatpush1.msra.mxu0 0.0
    %1343 = vmatprep.mubr.f32.mxu0 0.0
    %1344 = vmatmul.mubr.f32.gmra.mrb[0].mxu0 %v1271
    %v1345 = vpop.f32.mrb[0].mxu0
    %v1346 = vadd.f32 0.0, %v1345
    %v1347 = vpop.f32.mrb[0].mxu0
    %1348 = vmatprep.mubr.f32.mxu0 0.0
    %1349 = vmatmul.mubr.f32.gmra.mrb[0].mxu0 %v1274
    %v1350 = vpop.f32.mrb[0].mxu0
    %v1351 = vadd.f32 0.0, %v1350
    %v1352 = vpop.f32.mrb[0].mxu0
    %1353 = vdwg.mxu0
    %v1354 = vld [vmem:[%s2] sm:$0xff]
    %v1355 = vld [vmem:[%s2 + $0x8] sm:$0xff]
    %v1356 = vld [vmem:[%s2 + $0x10] sm:$0xff]
    %v1357 = vld [vmem:[%s2 + $0x18] sm:$0xff]
    %v1358 = vld [vmem:[%s2 + $0x20] sm:$0xff]
    %v1359 = vld [vmem:[%s2 + $0x28] sm:$0xff]
    %v1360 = vld [vmem:[%s2 + $0x30] sm:$0xff]
    %v1361 = vld [vmem:[%s2 + $0x38] sm:$0xff]
    %v1362 = vld [vmem:[%s2 + $0x40] sm:$0xff]
    %v1363 = vld [vmem:[%s2 + $0x48] sm:$0xff]
    %v1364 = vld [vmem:[%s2 + $0x50] sm:$0xff]
    %v1365 = vld [vmem:[%s2 + $0x58] sm:$0xff]
    %v1366 = vld [vmem:[%s2 + $0x60] sm:$0xff]
    %v1367 = vld [vmem:[%s2 + $0x68] sm:$0xff]
    %v1368 = vld [vmem:[%s2 + $0x70] sm:$0xff]
    %v1369 = vld [vmem:[%s2 + $0x78] sm:$0xff]
    %v1370 = vld [vmem:[%s2 + $0x80] sm:$0xff]
    %v1371 = vld [vmem:[%s2 + $0x88] sm:$0xff]
    %v1372 = vld [vmem:[%s2 + $0x90] sm:$0xff]
    %v1373 = vld [vmem:[%s2 + $0x98] sm:$0xff]
    %v1374 = vld [vmem:[%s160] sm:$0xff]
    %v1375 = vld [vmem:[%s160 + $0x8] sm:$0x3]
    %v1377 = vsel %vm54, %v1374, 0
    %v1380 = vsel %vm54, %v1375, 0
    %1382 = vmatprep.subr.mxu0 0.0
    %1383 = vmatpush1.msra.mxu0 %v1265
    %1384 = vmatprep.subr.mxu0 0.0
    %1385 = vmatpush1.msra.mxu0 %v1266
    %1386 = vmatprep.subr.mxu0 0.0
    %1387 = vmatpush1.msra.mxu0 %v1277
    %1388 = vmatprep.subr.mxu0 0.0
    %1389 = vmatpush1.msra.mxu0 0.0
    %1390 = vmatprep.subr.mxu0 0.0
    %1391 = vmatpush1.msra.mxu0 0.0
    %1392 = vmatprep.subr.mxu0 0.0
    %1393 = vmatpush1.msra.mxu0 0.0
    %1394 = vmatprep.subr.mxu0 0.0
    %1395 = vmatpush1.msra.mxu0 0.0
    %1396 = vmatprep.subr.mxu0 0.0
    %1397 = vmatpush1.msra.mxu0 0.0
    %1398 = vmatprep.subr.mxu0 0.0
    %1399 = vmatpush1.msra.mxu0 0.0
    %1400 = vmatprep.subr.mxu0 0.0
    %1401 = vmatpush1.msra.mxu0 0.0
    %1402 = vmatprep.subr.mxu0 0.0
    %1403 = vmatpush1.msra.mxu0 0.0
    %1404 = vmatprep.subr.mxu0 0.0
    %1405 = vmatpush1.msra.mxu0 0.0
    %1406 = vmatprep.subr.mxu0 0.0
    %1407 = vmatpush1.msra.mxu0 0.0
    %1408 = vmatprep.subr.mxu0 0.0
    %1409 = vmatpush1.msra.mxu0 0.0
    %1410 = vmatprep.subr.mxu0 0.0
    %1411 = vmatpush1.msra.mxu0 0.0
    %1412 = vmatprep.subr.mxu0 0.0
    %1413 = vmatpush1.msra.mxu0 0.0
    %1414 = vmatprep.subr.mxu0 0.0
    %1415 = vmatpush1.msra.mxu0 0.0
    %1416 = vmatprep.subr.mxu0 0.0
    %1417 = vmatpush1.msra.mxu0 0.0
    %1418 = vmatprep.subr.mxu0 0.0
    %1419 = vmatpush1.msra.mxu0 0.0
    %1420 = vmatprep.subr.mxu0 0.0
    %1421 = vmatpush1.msra.mxu0 0.0
    %1422 = vmatprep.subr.mxu0 0.0
    %1423 = vmatpush1.msra.mxu0 0.0
    %1424 = vmatprep.subr.mxu0 0.0
    %1425 = vmatpush1.msra.mxu0 0.0
    %1426 = vmatprep.subr.mxu0 0.0
    %1427 = vmatpush1.msra.mxu0 0.0
    %1428 = vmatprep.subr.mxu0 0.0
    %1429 = vmatpush1.msra.mxu0 0.0
    %1430 = vmatprep.subr.mxu0 0.0
    %1431 = vmatpush1.msra.mxu0 0.0
    %1432 = vmatprep.subr.mxu0 0.0
    %1433 = vmatpush1.msra.mxu0 0.0
    %1434 = vmatprep.subr.mxu0 0.0
    %1435 = vmatpush1.msra.mxu0 0.0
    %1436 = vmatprep.subr.mxu0 0.0
    %1437 = vmatpush1.msra.mxu0 0.0
    %1438 = vmatprep.subr.mxu0 0.0
    %1439 = vmatpush1.msra.mxu0 0.0
    %1440 = vmatprep.subr.mxu0 0.0
    %1441 = vmatpush1.msra.mxu0 0.0
    %1442 = vmatprep.subr.mxu0 0.0
    %1443 = vmatpush1.msra.mxu0 0.0
    %1444 = vmatprep.subr.mxu0 0.0
    %1445 = vmatpush1.msra.mxu0 0.0
    %1446 = vmatprep.mubr.f32.mxu0 0.0
    %1447 = vmatmul.mubr.f32.gmra.mrb[0].mxu0 %v1377
    %v1448 = vpop.f32.mrb[0].mxu0
    %v1449 = vadd.f32 0.0, %v1448
    %v1450 = vpop.f32.mrb[0].mxu0
    %1451 = vmatprep.mubr.f32.mxu0 0.0
    %1452 = vmatmul.mubr.f32.gmra.mrb[0].mxu0 %v1380
    %v1453 = vpop.f32.mrb[0].mxu0
    %v1454 = vadd.f32 0.0, %v1453
    %v1455 = vpop.f32.mrb[0].mxu0
    %1456 = vdwg.mxu0
    %v1457 = vld [vmem:[%s244] sm:$0xff]
    %v1458 = vld [vmem:[%s244 + $0x8] sm:$0xff]
    %v1459 = vld [vmem:[%s244 + $0x10] sm:$0xff]
    %v1460 = vld [vmem:[%s244 + $0x18] sm:$0xff]
    %v1461 = vld [vmem:[%s244 + $0x20] sm:$0xff]
    %v1462 = vld [vmem:[%s244 + $0x28] sm:$0xff]
    %v1463 = vld [vmem:[%s244 + $0x30] sm:$0xff]
    %v1464 = vld [vmem:[%s244 + $0x38] sm:$0xff]
    %v1465 = vld [vmem:[%s244 + $0x40] sm:$0xff]
    %v1466 = vld [vmem:[%s244 + $0x48] sm:$0xff]
    %v1467 = vld [vmem:[%s244 + $0x50] sm:$0xff]
    %v1468 = vld [vmem:[%s244 + $0x58] sm:$0xff]
    %v1469 = vld [vmem:[%s244 + $0x60] sm:$0xff]
    %v1470 = vld [vmem:[%s244 + $0x68] sm:$0xff]
    %v1471 = vld [vmem:[%s244 + $0x70] sm:$0xff]
    %v1472 = vld [vmem:[%s244 + $0x78] sm:$0xff]
    %v1473 = vld [vmem:[%s244 + $0x80] sm:$0xff]
    %v1474 = vld [vmem:[%s244 + $0x88] sm:$0xff]
    %v1475 = vld [vmem:[%s244 + $0x90] sm:$0xff]
    %v1476 = vld [vmem:[%s244 + $0x98] sm:$0xff]
    %v1478 = vsel %vm265, %v1449, 0
    %v1481 = vsel %vm265, %v1454, 0
    %1483 = vmatprep.subr.mxu0 %v1458
    %1484 = vmatpush1.msra.mxu0 %v1457
    %1485 = vmatprep.subr.mxu0 %v1460
    %1486 = vmatpush1.msra.mxu0 %v1459
    %1487 = vmatprep.subr.mxu0 %v1462
    %1488 = vmatpush1.msra.mxu0 %v1461
    %1489 = vmatprep.subr.mxu0 %v1464
    %1490 = vmatpush1.msra.mxu0 %v1463
    %1491 = vmatprep.subr.mxu0 %v1466
    %1492 = vmatpush1.msra.mxu0 %v1465
    %1493 = vmatprep.subr.mxu0 %v1468
    %1494 = vmatpush1.msra.mxu0 %v1467
    %1495 = vmatprep.subr.mxu0 %v1470
    %1496 = vmatpush1.msra.mxu0 %v1469
    %1497 = vmatprep.subr.mxu0 %v1472
    %1498 = vmatpush1.msra.mxu0 %v1471
    %1499 = vmatprep.subr.mxu0 %v1474
    %1500 = vmatpush1.msra.mxu0 %v1473
    %1501 = vmatprep.subr.mxu0 %v1476
    %1502 = vmatpush1.msra.mxu0 %v1475
    %1503 = vmatprep.subr.mxu0 0.0
    %1504 = vmatpush1.msra.mxu0 0.0
    %1505 = vmatprep.subr.mxu0 0.0
    %1506 = vmatpush1.msra.mxu0 0.0
    %1507 = vmatprep.subr.mxu0 0.0
    %1508 = vmatpush1.msra.mxu0 0.0
    %1509 = vmatprep.subr.mxu0 0.0
    %1510 = vmatpush1.msra.mxu0 0.0
    %1511 = vmatprep.subr.mxu0 0.0
    %1512 = vmatpush1.msra.mxu0 0.0
    %1513 = vmatprep.subr.mxu0 0.0
    %1514 = vmatpush1.msra.mxu0 0.0
    %1515 = vmatprep.subr.mxu0 0.0
    %1516 = vmatpush1.msra.mxu0 0.0
    %1517 = vmatprep.subr.mxu0 0.0
    %1518 = vmatpush1.msra.mxu0 0.0
    %1519 = vmatprep.subr.mxu0 0.0
    %1520 = vmatpush1.msra.mxu0 0.0
    %1521 = vmatprep.subr.mxu0 0.0
    %1522 = vmatpush1.msra.mxu0 0.0
    %1523 = vmatprep.subr.mxu0 0.0
    %1524 = vmatpush1.msra.mxu0 0.0
    %1525 = vmatprep.subr.mxu0 0.0
    %1526 = vmatpush1.msra.mxu0 0.0
    %1527 = vmatprep.subr.mxu0 0.0
    %1528 = vmatpush1.msra.mxu0 0.0
    %1529 = vmatprep.subr.mxu0 0.0
    %1530 = vmatpush1.msra.mxu0 0.0
    %1531 = vmatprep.subr.mxu0 0.0
    %1532 = vmatpush1.msra.mxu0 0.0
    %1533 = vmatprep.subr.mxu0 0.0
    %1534 = vmatpush1.msra.mxu0 0.0
    %1535 = vmatprep.subr.mxu0 0.0
    %1536 = vmatpush1.msra.mxu0 0.0
    %1537 = vmatprep.subr.mxu0 0.0
    %1538 = vmatpush1.msra.mxu0 0.0
    %1539 = vmatprep.subr.mxu0 0.0
    %1540 = vmatpush1.msra.mxu0 0.0
    %1541 = vmatprep.subr.mxu0 0.0
    %1542 = vmatpush1.msra.mxu0 0.0
    %1543 = vmatprep.subr.mxu0 0.0
    %1544 = vmatpush1.msra.mxu0 0.0
    %1545 = vmatprep.subr.mxu0 0.0
    %1546 = vmatpush1.msra.mxu0 0.0
    %1547 = vmatprep.mubr.f32.mxu0 0.0
    %1548 = vmatmul.mubr.f32.gmra.mrb[0].mxu0 %v1478
    %v1549 = vpop.f32.mrb[0].mxu0
    %v1550 = vadd.f32 0.0, %v1549
    %v1551 = vpop.f32.mrb[0].mxu0
    %v1552 = vadd.f32 0.0, %v1551
    %1553 = vmatprep.mubr.f32.mxu0 0.0
    %1554 = vmatmul.mubr.f32.gmra.mrb[0].mxu0 %v1481
    %v1555 = vpop.f32.mrb[0].mxu0
    %v1556 = vadd.f32 0.0, %v1555
    %v1557 = vpop.f32.mrb[0].mxu0
    %v1558 = vadd.f32 0.0, %v1557
    %1559 = vdwg.mxu0
    %v1561 = vsel %vm265, %v1346, 0
    %v1564 = vsel %vm265, %v1351, 0
    %1566 = vmatprep.subr.mxu0 %v1355
    %1567 = vmatpush1.msra.mxu0 %v1354
    %1568 = vmatprep.subr.mxu0 %v1357
    %1569 = vmatpush1.msra.mxu0 %v1356
    %1570 = vmatprep.subr.mxu0 %v1359
    %1571 = vmatpush1.msra.mxu0 %v1358
    %1572 = vmatprep.subr.mxu0 %v1361
    %1573 = vmatpush1.msra.mxu0 %v1360
    %1574 = vmatprep.subr.mxu0 %v1363
    %1575 = vmatpush1.msra.mxu0 %v1362
    %1576 = vmatprep.subr.mxu0 %v1365
    %1577 = vmatpush1.msra.mxu0 %v1364
    %1578 = vmatprep.subr.mxu0 %v1367
    %1579 = vmatpush1.msra.mxu0 %v1366
    %1580 = vmatprep.subr.mxu0 %v1369
    %1581 = vmatpush1.msra.mxu0 %v1368
    %1582 = vmatprep.subr.mxu0 %v1371
    %1583 = vmatpush1.msra.mxu0 %v1370
    %1584 = vmatprep.subr.mxu0 %v1373
    %1585 = vmatpush1.msra.mxu0 %v1372
    %1586 = vmatprep.subr.mxu0 0.0
    %1587 = vmatpush1.msra.mxu0 0.0
    %1588 = vmatprep.subr.mxu0 0.0
    %1589 = vmatpush1.msra.mxu0 0.0
    %1590 = vmatprep.subr.mxu0 0.0
    %1591 = vmatpush1.msra.mxu0 0.0
    %1592 = vmatprep.subr.mxu0 0.0
    %1593 = vmatpush1.msra.mxu0 0.0
    %1594 = vmatprep.subr.mxu0 0.0
    %1595 = vmatpush1.msra.mxu0 0.0
    %1596 = vmatprep.subr.mxu0 0.0
    %1597 = vmatpush1.msra.mxu0 0.0
    %1598 = vmatprep.subr.mxu0 0.0
    %1599 = vmatpush1.msra.mxu0 0.0
    %1600 = vmatprep.subr.mxu0 0.0
    %1601 = vmatpush1.msra.mxu0 0.0
    %1602 = vmatprep.subr.mxu0 0.0
    %1603 = vmatpush1.msra.mxu0 0.0
    %1604 = vmatprep.subr.mxu0 0.0
    %1605 = vmatpush1.msra.mxu0 0.0
    %1606 = vmatprep.subr.mxu0 0.0
    %1607 = vmatpush1.msra.mxu0 0.0
    %1608 = vmatprep.subr.mxu0 0.0
    %1609 = vmatpush1.msra.mxu0 0.0
    %1610 = vmatprep.subr.mxu0 0.0
    %1611 = vmatpush1.msra.mxu0 0.0
    %1612 = vmatprep.subr.mxu0 0.0
    %1613 = vmatpush1.msra.mxu0 0.0
    %1614 = vmatprep.subr.mxu0 0.0
    %1615 = vmatpush1.msra.mxu0 0.0
    %1616 = vmatprep.subr.mxu0 0.0
    %1617 = vmatpush1.msra.mxu0 0.0
    %1618 = vmatprep.subr.mxu0 0.0
    %1619 = vmatpush1.msra.mxu0 0.0
    %1620 = vmatprep.subr.mxu0 0.0
    %1621 = vmatpush1.msra.mxu0 0.0
    %1622 = vmatprep.subr.mxu0 0.0
    %1623 = vmatpush1.msra.mxu0 0.0
    %1624 = vmatprep.subr.mxu0 0.0
    %1625 = vmatpush1.msra.mxu0 0.0
    %1626 = vmatprep.subr.mxu0 0.0
    %1627 = vmatpush1.msra.mxu0 0.0
    %1628 = vmatprep.subr.mxu0 0.0
    %1629 = vmatpush1.msra.mxu0 0.0
    %1630 = vmatprep.mubr.f32.mxu0 0.0
    %1631 = vmatmul.mubr.f32.gmra.mrb[0].mxu0 %v1561
    %v1632 = vpop.f32.mrb[0].mxu0
    %v1633 = vadd.f32 %v1550, %v1632
    %v1634 = vpop.f32.mrb[0].mxu0
    %v1635 = vadd.f32 %v1552, %v1634
    %1636 = vmatprep.mubr.f32.mxu0 0.0
    %1637 = vmatmul.mubr.f32.gmra.mrb[0].mxu0 %v1564
    %v1638 = vpop.f32.mrb[0].mxu0
    %v1639 = vadd.f32 %v1556, %v1638
    %v1640 = vpop.f32.mrb[0].mxu0
    %v1641 = vadd.f32 %v1558, %v1640
    %1642 = vdwg.mxu0
    %v1643 = vld [vmem:[%s432] sm:$0xff]
    %v1644 = vld [vmem:[%s432 + $0x8] sm:$0x3]
    %v1646 = vsel %vm54, %v1643, 0
    %v1649 = vsel %vm54, %v1644, 0
    %1651 = vmatprep.subr.mxu0 0.0
    %1652 = vmatpush1.msra.mxu0 %v1265
    %1653 = vmatprep.subr.mxu0 0.0
    %1654 = vmatpush1.msra.mxu0 %v1266
    %1655 = vmatprep.subr.mxu0 0.0
    %1656 = vmatpush1.msra.mxu0 %v1277
    %1657 = vmatprep.subr.mxu0 0.0
    %1658 = vmatpush1.msra.mxu0 0.0
    %1659 = vmatprep.subr.mxu0 0.0
    %1660 = vmatpush1.msra.mxu0 0.0
    %1661 = vmatprep.subr.mxu0 0.0
    %1662 = vmatpush1.msra.mxu0 0.0
    %1663 = vmatprep.subr.mxu0 0.0
    %1664 = vmatpush1.msra.mxu0 0.0
    %1665 = vmatprep.subr.mxu0 0.0
    %1666 = vmatpush1.msra.mxu0 0.0
    %1667 = vmatprep.subr.mxu0 0.0
    %1668 = vmatpush1.msra.mxu0 0.0
    %1669 = vmatprep.subr.mxu0 0.0
    %1670 = vmatpush1.msra.mxu0 0.0
    %1671 = vmatprep.subr.mxu0 0.0
    %1672 = vmatpush1.msra.mxu0 0.0
    %1673 = vmatprep.subr.mxu0 0.0
    %1674 = vmatpush1.msra.mxu0 0.0
    %1675 = vmatprep.subr.mxu0 0.0
    %1676 = vmatpush1.msra.mxu0 0.0
    %1677 = vmatprep.subr.mxu0 0.0
    %1678 = vmatpush1.msra.mxu0 0.0
    %1679 = vmatprep.subr.mxu0 0.0
    %1680 = vmatpush1.msra.mxu0 0.0
    %1681 = vmatprep.subr.mxu0 0.0
    %1682 = vmatpush1.msra.mxu0 0.0
    %1683 = vmatprep.subr.mxu0 0.0
    %1684 = vmatpush1.msra.mxu0 0.0
    %1685 = vmatprep.subr.mxu0 0.0
    %1686 = vmatpush1.msra.mxu0 0.0
    %1687 = vmatprep.subr.mxu0 0.0
    %1688 = vmatpush1.msra.mxu0 0.0
    %1689 = vmatprep.subr.mxu0 0.0
    %1690 = vmatpush1.msra.mxu0 0.0
    %1691 = vmatprep.subr.mxu0 0.0
    %1692 = vmatpush1.msra.mxu0 0.0
    %1693 = vmatprep.subr.mxu0 0.0
    %1694 = vmatpush1.msra.mxu0 0.0
    %1695 = vmatprep.subr.mxu0 0.0
    %1696 = vmatpush1.msra.mxu0 0.0
    %1697 = vmatprep.subr.mxu0 0.0
    %1698 = vmatpush1.msra.mxu0 0.0
    %1699 = vmatprep.subr.mxu0 0.0
    %1700 = vmatpush1.msra.mxu0 0.0
    %1701 = vmatprep.subr.mxu0 0.0
    %1702 = vmatpush1.msra.mxu0 0.0
    %1703 = vmatprep.subr.mxu0 0.0
    %1704 = vmatpush1.msra.mxu0 0.0
    %1705 = vmatprep.subr.mxu0 0.0
    %1706 = vmatpush1.msra.mxu0 0.0
    %1707 = vmatprep.subr.mxu0 0.0
    %1708 = vmatpush1.msra.mxu0 0.0
    %1709 = vmatprep.subr.mxu0 0.0
    %1710 = vmatpush1.msra.mxu0 0.0
    %1711 = vmatprep.subr.mxu0 0.0
    %1712 = vmatpush1.msra.mxu0 0.0
    %1713 = vmatprep.subr.mxu0 0.0
    %1714 = vmatpush1.msra.mxu0 0.0
    %1715 = vmatprep.mubr.f32.mxu0 0.0
    %1716 = vmatmul.mubr.f32.gmra.mrb[0].mxu0 %v1646
    %v1717 = vpop.f32.mrb[0].mxu0
    %v1718 = vadd.f32 0.0, %v1717
    %v1719 = vpop.f32.mrb[0].mxu0
    %1720 = vmatprep.mubr.f32.mxu0 0.0
    %1721 = vmatmul.mubr.f32.gmra.mrb[0].mxu0 %v1649
    %v1722 = vpop.f32.mrb[0].mxu0
    %v1723 = vadd.f32 0.0, %v1722
    %v1724 = vpop.f32.mrb[0].mxu0
    %1725 = vdwg.mxu0
    %v1726 = vld [vmem:[%s516] sm:$0xff]
    %v1727 = vld [vmem:[%s516 + $0x8] sm:$0xff]
    %v1728 = vld [vmem:[%s516 + $0x10] sm:$0xff]
    %v1729 = vld [vmem:[%s516 + $0x18] sm:$0xff]
    %v1730 = vld [vmem:[%s516 + $0x20] sm:$0xff]
    %v1731 = vld [vmem:[%s516 + $0x28] sm:$0xff]
    %v1732 = vld [vmem:[%s516 + $0x30] sm:$0xff]
    %v1733 = vld [vmem:[%s516 + $0x38] sm:$0xff]
    %v1734 = vld [vmem:[%s516 + $0x40] sm:$0xff]
    %v1735 = vld [vmem:[%s516 + $0x48] sm:$0xff]
    %v1736 = vld [vmem:[%s516 + $0x50] sm:$0xff]
    %v1737 = vld [vmem:[%s516 + $0x58] sm:$0xff]
    %v1738 = vld [vmem:[%s516 + $0x60] sm:$0xff]
    %v1739 = vld [vmem:[%s516 + $0x68] sm:$0xff]
    %v1740 = vld [vmem:[%s516 + $0x70] sm:$0xff]
    %v1741 = vld [vmem:[%s516 + $0x78] sm:$0xff]
    %v1742 = vld [vmem:[%s516 + $0x80] sm:$0xff]
    %v1743 = vld [vmem:[%s516 + $0x88] sm:$0xff]
    %v1744 = vld [vmem:[%s516 + $0x90] sm:$0xff]
    %v1745 = vld [vmem:[%s516 + $0x98] sm:$0xff]
    %v1747 = vsel %vm265, %v1718, 0
    %v1750 = vsel %vm265, %v1723, 0
    %1752 = vmatprep.subr.mxu0 %v1727
    %1753 = vmatpush1.msra.mxu0 %v1726
    %1754 = vmatprep.subr.mxu0 %v1729
    %1755 = vmatpush1.msra.mxu0 %v1728
    %1756 = vmatprep.subr.mxu0 %v1731
    %1757 = vmatpush1.msra.mxu0 %v1730
    %1758 = vmatprep.subr.mxu0 %v1733
    %1759 = vmatpush1.msra.mxu0 %v1732
    %1760 = vmatprep.subr.mxu0 %v1735
    %1761 = vmatpush1.msra.mxu0 %v1734
    %1762 = vmatprep.subr.mxu0 %v1737
    %1763 = vmatpush1.msra.mxu0 %v1736
    %1764 = vmatprep.subr.mxu0 %v1739
    %1765 = vmatpush1.msra.mxu0 %v1738
    %1766 = vmatprep.subr.mxu0 %v1741
    %1767 = vmatpush1.msra.mxu0 %v1740
    %1768 = vmatprep.subr.mxu0 %v1743
    %1769 = vmatpush1.msra.mxu0 %v1742
    %1770 = vmatprep.subr.mxu0 %v1745
    %1771 = vmatpush1.msra.mxu0 %v1744
    %1772 = vmatprep.subr.mxu0 0.0
    %1773 = vmatpush1.msra.mxu0 0.0
    %1774 = vmatprep.subr.mxu0 0.0
    %1775 = vmatpush1.msra.mxu0 0.0
    %1776 = vmatprep.subr.mxu0 0.0
    %1777 = vmatpush1.msra.mxu0 0.0
    %1778 = vmatprep.subr.mxu0 0.0
    %1779 = vmatpush1.msra.mxu0 0.0
    %1780 = vmatprep.subr.mxu0 0.0
    %1781 = vmatpush1.msra.mxu0 0.0
    %1782 = vmatprep.subr.mxu0 0.0
    %1783 = vmatpush1.msra.mxu0 0.0
    %1784 = vmatprep.subr.mxu0 0.0
    %1785 = vmatpush1.msra.mxu0 0.0
    %1786 = vmatprep.subr.mxu0 0.0
    %1787 = vmatpush1.msra.mxu0 0.0
    %1788 = vmatprep.subr.mxu0 0.0
    %1789 = vmatpush1.msra.mxu0 0.0
    %1790 = vmatprep.subr.mxu0 0.0
    %1791 = vmatpush1.msra.mxu0 0.0
    %1792 = vmatprep.subr.mxu0 0.0
    %1793 = vmatpush1.msra.mxu0 0.0
    %1794 = vmatprep.subr.mxu0 0.0
    %1795 = vmatpush1.msra.mxu0 0.0
    %1796 = vmatprep.subr.mxu0 0.0
    %1797 = vmatpush1.msra.mxu0 0.0
    %1798 = vmatprep.subr.mxu0 0.0
    %1799 = vmatpush1.msra.mxu0 0.0
    %1800 = vmatprep.subr.mxu0 0.0
    %1801 = vmatpush1.msra.mxu0 0.0
    %1802 = vmatprep.subr.mxu0 0.0
    %1803 = vmatpush1.msra.mxu0 0.0
    %1804 = vmatprep.subr.mxu0 0.0
    %1805 = vmatpush1.msra.mxu0 0.0
    %1806 = vmatprep.subr.mxu0 0.0
    %1807 = vmatpush1.msra.mxu0 0.0
    %1808 = vmatprep.subr.mxu0 0.0
    %1809 = vmatpush1.msra.mxu0 0.0
    %1810 = vmatprep.subr.mxu0 0.0
    %1811 = vmatpush1.msra.mxu0 0.0
    %1812 = vmatprep.subr.mxu0 0.0
    %1813 = vmatpush1.msra.mxu0 0.0
    %1814 = vmatprep.subr.mxu0 0.0
    %1815 = vmatpush1.msra.mxu0 0.0
    %1816 = vmatprep.mubr.f32.mxu0 0.0
    %1817 = vmatmul.mubr.f32.gmra.mrb[0].mxu0 %v1747
    %v1818 = vpop.f32.mrb[0].mxu0
    %v1819 = vadd.f32 0.0, %v1818
    %v1820 = vpop.f32.mrb[0].mxu0
    %v1821 = vadd.f32 0.0, %v1820
    %1822 = vmatprep.mubr.f32.mxu0 0.0
    %1823 = vmatmul.mubr.f32.gmra.mrb[0].mxu0 %v1750
    %v1824 = vpop.f32.mrb[0].mxu0
    %v1825 = vadd.f32 0.0, %v1824
    %v1826 = vpop.f32.mrb[0].mxu0
    %v1827 = vadd.f32 0.0, %v1826
    %1828 = vdwg.mxu0
    %v1829 = vadd.f32 %v1633, %v1819
    %v1830 = vadd.f32 %v1635, %v1821
    %v1831 = vadd.f32 %v1639, %v1825
    %v1832 = vadd.f32 %v1641, %v1827
    %v1833 = vld [vmem:[%s3] sm:$0x3]
    %v1835 = vlaneseq
    %v1836 = vshrl.u32 %v1835, 7
    %v1837 = vsub.s32 0, %v1836
    %v1838 = vrot.slane %v1833, %v1837
    %v1839 = vlaneseq
    %v1840 = vshrl.u32 %v1839, 7
    %v1841 = vsub.s32 1, %v1840
    %v1842 = vrot.slane %v1833, %v1841
    %v1845 = vadd.f32 %v1829, %v1838
    %v1846 = vadd.f32 %v1830, %v1842
    %v1847 = vadd.f32 %v1831, %v1838
    %v1848 = vadd.f32 %v1832, %v1842
    %v1849 = vmax.f32 %v1845, 0.0
    %v1850 = vmax.f32 %v1846, 0.0
    %v1851 = vmax.f32 %v1847, 0.0
    %v1852 = vmax.f32 %v1848, 0.0
    %v1853 = vld [vmem:[%s4] sm:$0x1f]
    %v1855 = vsel %vm645, %v1853, 0
    %v1858 = vsel %vm649, %v1851, 0
    %v1861 = vsel %vm649, %v1852, 0
    %1863 = vmatprep.subr.mxu0 %v1850
    %1864 = vmatpush1.msra.mxu0 %v1849
    %1865 = vmatprep.subr.mxu0 %v1861
    %1866 = vmatpush1.msra.mxu0 %v1858
    %1867 = vmatprep.subr.mxu0 0.0
    %1868 = vmatpush1.msra.mxu0 0.0
    %1869 = vmatprep.subr.mxu0 0.0
    %1870 = vmatpush1.msra.mxu0 0.0
    %1871 = vmatprep.subr.mxu0 0.0
    %1872 = vmatpush1.msra.mxu0 0.0
    %1873 = vmatprep.subr.mxu0 0.0
    %1874 = vmatpush1.msra.mxu0 0.0
    %1875 = vmatprep.subr.mxu0 0.0
    %1876 = vmatpush1.msra.mxu0 0.0
    %1877 = vmatprep.subr.mxu0 0.0
    %1878 = vmatpush1.msra.mxu0 0.0
    %1879 = vmatprep.subr.mxu0 0.0
    %1880 = vmatpush1.msra.mxu0 0.0
    %1881 = vmatprep.subr.mxu0 0.0
    %1882 = vmatpush1.msra.mxu0 0.0
    %1883 = vmatprep.subr.mxu0 0.0
    %1884 = vmatpush1.msra.mxu0 0.0
    %1885 = vmatprep.subr.mxu0 0.0
    %1886 = vmatpush1.msra.mxu0 0.0
    %1887 = vmatprep.subr.mxu0 0.0
    %1888 = vmatpush1.msra.mxu0 0.0
    %1889 = vmatprep.subr.mxu0 0.0
    %1890 = vmatpush1.msra.mxu0 0.0
    %1891 = vmatprep.subr.mxu0 0.0
    %1892 = vmatpush1.msra.mxu0 0.0
    %1893 = vmatprep.subr.mxu0 0.0
    %1894 = vmatpush1.msra.mxu0 0.0
    %1895 = vmatprep.subr.mxu0 0.0
    %1896 = vmatpush1.msra.mxu0 0.0
    %1897 = vmatprep.subr.mxu0 0.0
    %1898 = vmatpush1.msra.mxu0 0.0
    %1899 = vmatprep.subr.mxu0 0.0
    %1900 = vmatpush1.msra.mxu0 0.0
    %1901 = vmatprep.subr.mxu0 0.0
    %1902 = vmatpush1.msra.mxu0 0.0
    %1903 = vmatprep.subr.mxu0 0.0
    %1904 = vmatpush1.msra.mxu0 0.0
    %1905 = vmatprep.subr.mxu0 0.0
    %1906 = vmatpush1.msra.mxu0 0.0
    %1907 = vmatprep.subr.mxu0 0.0
    %1908 = vmatpush1.msra.mxu0 0.0
    %1909 = vmatprep.subr.mxu0 0.0
    %1910 = vmatpush1.msra.mxu0 0.0
    %1911 = vmatprep.subr.mxu0 0.0
    %1912 = vmatpush1.msra.mxu0 0.0
    %1913 = vmatprep.subr.mxu0 0.0
    %1914 = vmatpush1.msra.mxu0 0.0
    %1915 = vmatprep.subr.mxu0 0.0
    %1916 = vmatpush1.msra.mxu0 0.0
    %1917 = vmatprep.subr.mxu0 0.0
    %1918 = vmatpush1.msra.mxu0 0.0
    %1919 = vmatprep.subr.mxu0 0.0
    %1920 = vmatpush1.msra.mxu0 0.0
    %1921 = vmatprep.subr.mxu0 0.0
    %1922 = vmatpush1.msra.mxu0 0.0
    %1923 = vmatprep.subr.mxu0 0.0
    %1924 = vmatpush1.msra.mxu0 0.0
    %1925 = vmatprep.subr.mxu0 0.0
    %1926 = vmatpush1.msra.mxu0 0.0
    %1927 = vmatprep.mubr.f32.mxu0 0.0
    %1928 = vmatmul.mubr.f32.gmra.mrb[0].mxu0 %v1855
    %v1929 = vpop.f32.mrb[0].mxu0
    %v1930 = vadd.f32 0.0, %v1929
    %v1931 = vpop.f32.mrb[0].mxu0
    %v1932 = vadd.f32 0.0, %v1931
    %1933 = vdwg.mxu0
    %v1934 = vld [vmem:[#allocation3] sm:$0xff]
    %v1935 = vld [vmem:[#allocation3 + $0x8] sm:$0xff]
    %v1936 = vld [vmem:[#allocation3 + $0x10] sm:$0xff]
    %v1937 = vld [vmem:[#allocation3 + $0x18] sm:$0xff]
    %v1938 = vld [vmem:[#allocation3 + $0x20] sm:$0xff]
    %v1939 = vld [vmem:[#allocation3 + $0x28] sm:$0xff]
    %v1940 = vld [vmem:[#allocation3 + $0x30] sm:$0xff]
    %v1941 = vld [vmem:[#allocation3 + $0x38] sm:$0xff]
    %v1942 = vld [vmem:[#allocation3 + $0x40] sm:$0xff]
    %v1943 = vld [vmem:[#allocation3 + $0x48] sm:$0xff]
    %v1944 = vld [vmem:[#allocation3 + $0x50] sm:$0xff]
    %v1945 = vld [vmem:[#allocation3 + $0x58] sm:$0xff]
    %v1946 = vld [vmem:[#allocation3 + $0x60] sm:$0xff]
    %v1947 = vld [vmem:[#allocation3 + $0x68] sm:$0xff]
    %v1948 = vld [vmem:[#allocation3 + $0x70] sm:$0xff]
    %v1949 = vld [vmem:[#allocation3 + $0x78] sm:$0xff]
    %v1950 = vld [vmem:[#allocation3 + $0x80] sm:$0xff]
    %v1951 = vld [vmem:[#allocation3 + $0x88] sm:$0xff]
    %v1952 = vld [vmem:[#allocation3 + $0x90] sm:$0xff]
    %v1953 = vld [vmem:[#allocation3 + $0x98] sm:$0xff]
    %v1954 = vld [vmem:[#allocation3 + $0xa0] sm:$0xff]
    %v1955 = vld [vmem:[#allocation3 + $0xa8] sm:$0xff]
    %v1956 = vld [vmem:[#allocation3 + $0xb0] sm:$0xff]
    %v1957 = vld [vmem:[#allocation3 + $0xb8] sm:$0xff]
    %v1958 = vld [vmem:[#allocation3 + $0xc0] sm:$0xff]
    %v1959 = vld [vmem:[#allocation3 + $0xc8] sm:$0xff]
    %v1960 = vld [vmem:[#allocation3 + $0xd0] sm:$0xff]
    %v1961 = vld [vmem:[#allocation3 + $0xd8] sm:$0xff]
    %v1962 = vld [vmem:[#allocation3 + $0xe0] sm:$0xff]
    %v1963 = vld [vmem:[#allocation3 + $0xe8] sm:$0xff]
    %v1964 = vld [vmem:[#allocation3 + $0xf0] sm:$0xff]
    %v1965 = vld [vmem:[#allocation3 + $0xf8] sm:$0xff]
    %v1966 = vld [vmem:[#allocation3 + $0x100] sm:$0xff]
    %v1967 = vld [vmem:[#allocation3 + $0x108] sm:$0xff]
    %v1968 = vld [vmem:[#allocation3 + $0x110] sm:$0xff]
    %v1969 = vld [vmem:[#allocation3 + $0x118] sm:$0xff]
    %v1970 = vld [vmem:[#allocation3 + $0x120] sm:$0xff]
    %v1971 = vld [vmem:[#allocation3 + $0x128] sm:$0xff]
    %v1972 = vld [vmem:[#allocation3 + $0x130] sm:$0xff]
    %v1973 = vld [vmem:[#allocation3 + $0x138] sm:$0xff]
    %v1974 = vld [vmem:[%s767] sm:$0x1f]
    %v1976 = vsel %vm645, %v1974, 0
    %1978 = vmatprep.subr.mxu0 %v1850
    %1979 = vmatpush1.msra.mxu0 %v1849
    %1980 = vmatprep.subr.mxu0 %v1861
    %1981 = vmatpush1.msra.mxu0 %v1858
    %1982 = vmatprep.subr.mxu0 0.0
    %1983 = vmatpush1.msra.mxu0 0.0
    %1984 = vmatprep.subr.mxu0 0.0
    %1985 = vmatpush1.msra.mxu0 0.0
    %1986 = vmatprep.subr.mxu0 0.0
    %1987 = vmatpush1.msra.mxu0 0.0
    %1988 = vmatprep.subr.mxu0 0.0
    %1989 = vmatpush1.msra.mxu0 0.0
    %1990 = vmatprep.subr.mxu0 0.0
    %1991 = vmatpush1.msra.mxu0 0.0
    %1992 = vmatprep.subr.mxu0 0.0
    %1993 = vmatpush1.msra.mxu0 0.0
    %1994 = vmatprep.subr.mxu0 0.0
    %1995 = vmatpush1.msra.mxu0 0.0
    %1996 = vmatprep.subr.mxu0 0.0
    %1997 = vmatpush1.msra.mxu0 0.0
    %1998 = vmatprep.subr.mxu0 0.0
    %1999 = vmatpush1.msra.mxu0 0.0
    %2000 = vmatprep.subr.mxu0 0.0
    %2001 = vmatpush1.msra.mxu0 0.0
    %2002 = vmatprep.subr.mxu0 0.0
    %2003 = vmatpush1.msra.mxu0 0.0
    %2004 = vmatprep.subr.mxu0 0.0
    %2005 = vmatpush1.msra.mxu0 0.0
    %2006 = vmatprep.subr.mxu0 0.0
    %2007 = vmatpush1.msra.mxu0 0.0
    %2008 = vmatprep.subr.mxu0 0.0
    %2009 = vmatpush1.msra.mxu0 0.0
    %2010 = vmatprep.subr.mxu0 0.0
    %2011 = vmatpush1.msra.mxu0 0.0
    %2012 = vmatprep.subr.mxu0 0.0
    %2013 = vmatpush1.msra.mxu0 0.0
    %2014 = vmatprep.subr.mxu0 0.0
    %2015 = vmatpush1.msra.mxu0 0.0
    %2016 = vmatprep.subr.mxu0 0.0
    %2017 = vmatpush1.msra.mxu0 0.0
    %2018 = vmatprep.subr.mxu0 0.0
    %2019 = vmatpush1.msra.mxu0 0.0
    %2020 = vmatprep.subr.mxu0 0.0
    %2021 = vmatpush1.msra.mxu0 0.0
    %2022 = vmatprep.subr.mxu0 0.0
    %2023 = vmatpush1.msra.mxu0 0.0
    %2024 = vmatprep.subr.mxu0 0.0
    %2025 = vmatpush1.msra.mxu0 0.0
    %2026 = vmatprep.subr.mxu0 0.0
    %2027 = vmatpush1.msra.mxu0 0.0
    %2028 = vmatprep.subr.mxu0 0.0
    %2029 = vmatpush1.msra.mxu0 0.0
    %2030 = vmatprep.subr.mxu0 0.0
    %2031 = vmatpush1.msra.mxu0 0.0
    %2032 = vmatprep.subr.mxu0 0.0
    %2033 = vmatpush1.msra.mxu0 0.0
    %2034 = vmatprep.subr.mxu0 0.0
    %2035 = vmatpush1.msra.mxu0 0.0
    %2036 = vmatprep.subr.mxu0 0.0
    %2037 = vmatpush1.msra.mxu0 0.0
    %2038 = vmatprep.subr.mxu0 0.0
    %2039 = vmatpush1.msra.mxu0 0.0
    %2040 = vmatprep.subr.mxu0 0.0
    %2041 = vmatpush1.msra.mxu0 0.0
    %2042 = vmatprep.mubr.f32.mxu0 0.0
    %2043 = vmatmul.mubr.f32.gmra.mrb[0].mxu0 %v1976
    %v2044 = vpop.f32.mrb[0].mxu0
    %v2045 = vadd.f32 0.0, %v2044
    %v2046 = vpop.f32.mrb[0].mxu0
    %v2047 = vadd.f32 0.0, %v2046
    %2048 = vdwg.mxu0
    %v2049 = vld [vmem:[%s843] sm:$0xff]
    %v2050 = vld [vmem:[%s843 + $0x8] sm:$0xff]
    %v2051 = vld [vmem:[%s843 + $0x10] sm:$0xff]
    %v2052 = vld [vmem:[%s843 + $0x18] sm:$0xff]
    %v2053 = vld [vmem:[%s843 + $0x20] sm:$0xff]
    %v2054 = vld [vmem:[%s843 + $0x28] sm:$0xff]
    %v2055 = vld [vmem:[%s843 + $0x30] sm:$0xff]
    %v2056 = vld [vmem:[%s843 + $0x38] sm:$0xff]
    %v2057 = vld [vmem:[%s843 + $0x40] sm:$0xff]
    %v2058 = vld [vmem:[%s843 + $0x48] sm:$0xff]
    %v2059 = vld [vmem:[%s843 + $0x50] sm:$0xff]
    %v2060 = vld [vmem:[%s843 + $0x58] sm:$0xff]
    %v2061 = vld [vmem:[%s843 + $0x60] sm:$0xff]
    %v2062 = vld [vmem:[%s843 + $0x68] sm:$0xff]
    %v2063 = vld [vmem:[%s843 + $0x70] sm:$0xff]
    %v2064 = vld [vmem:[%s843 + $0x78] sm:$0xff]
    %v2065 = vld [vmem:[%s843 + $0x80] sm:$0xff]
    %v2066 = vld [vmem:[%s843 + $0x88] sm:$0xff]
    %v2067 = vld [vmem:[%s843 + $0x90] sm:$0xff]
    %v2068 = vld [vmem:[%s843 + $0x98] sm:$0xff]
    %v2069 = vld [vmem:[%s843 + $0xa0] sm:$0xff]
    %v2070 = vld [vmem:[%s843 + $0xa8] sm:$0xff]
    %v2071 = vld [vmem:[%s843 + $0xb0] sm:$0xff]
    %v2072 = vld [vmem:[%s843 + $0xb8] sm:$0xff]
    %v2073 = vld [vmem:[%s843 + $0xc0] sm:$0xff]
    %v2074 = vld [vmem:[%s843 + $0xc8] sm:$0xff]
    %v2075 = vld [vmem:[%s843 + $0xd0] sm:$0xff]
    %v2076 = vld [vmem:[%s843 + $0xd8] sm:$0xff]
    %v2077 = vld [vmem:[%s843 + $0xe0] sm:$0xff]
    %v2078 = vld [vmem:[%s843 + $0xe8] sm:$0xff]
    %v2079 = vld [vmem:[%s843 + $0xf0] sm:$0xff]
    %v2080 = vld [vmem:[%s843 + $0xf8] sm:$0xff]
    %v2081 = vld [vmem:[%s843 + $0x100] sm:$0xff]
    %v2082 = vld [vmem:[%s843 + $0x108] sm:$0xff]
    %v2083 = vld [vmem:[%s843 + $0x110] sm:$0xff]
    %v2084 = vld [vmem:[%s843 + $0x118] sm:$0xff]
    %v2085 = vld [vmem:[%s843 + $0x120] sm:$0xff]
    %v2086 = vld [vmem:[%s843 + $0x128] sm:$0xff]
    %v2087 = vld [vmem:[%s843 + $0x130] sm:$0xff]
    %v2088 = vld [vmem:[%s843 + $0x138] sm:$0xff]
    %v2090 = vsel %vm884, %v2047, 0
    %2092 = vmatprep.subr.mxu0 %v2050
    %2093 = vmatpush1.msra.mxu0 %v2049
    %2094 = vmatprep.subr.mxu0 %v2052
    %2095 = vmatpush1.msra.mxu0 %v2051
    %2096 = vmatprep.subr.mxu0 %v2054
    %2097 = vmatpush1.msra.mxu0 %v2053
    %2098 = vmatprep.subr.mxu0 %v2056
    %2099 = vmatpush1.msra.mxu0 %v2055
    %2100 = vmatprep.subr.mxu0 %v2058
    %2101 = vmatpush1.msra.mxu0 %v2057
    %2102 = vmatprep.subr.mxu0 %v2060
    %2103 = vmatpush1.msra.mxu0 %v2059
    %2104 = vmatprep.subr.mxu0 %v2062
    %2105 = vmatpush1.msra.mxu0 %v2061
    %2106 = vmatprep.subr.mxu0 %v2064
    %2107 = vmatpush1.msra.mxu0 %v2063
    %2108 = vmatprep.subr.mxu0 %v2066
    %2109 = vmatpush1.msra.mxu0 %v2065
    %2110 = vmatprep.subr.mxu0 %v2068
    %2111 = vmatpush1.msra.mxu0 %v2067
    %2112 = vmatprep.subr.mxu0 %v2070
    %2113 = vmatpush1.msra.mxu0 %v2069
    %2114 = vmatprep.subr.mxu0 %v2072
    %2115 = vmatpush1.msra.mxu0 %v2071
    %2116 = vmatprep.subr.mxu0 %v2074
    %2117 = vmatpush1.msra.mxu0 %v2073
    %2118 = vmatprep.subr.mxu0 %v2076
    %2119 = vmatpush1.msra.mxu0 %v2075
    %2120 = vmatprep.subr.mxu0 %v2078
    %2121 = vmatpush1.msra.mxu0 %v2077
    %2122 = vmatprep.subr.mxu0 %v2080
    %2123 = vmatpush1.msra.mxu0 %v2079
    %2124 = vmatprep.subr.mxu0 %v2082
    %2125 = vmatpush1.msra.mxu0 %v2081
    %2126 = vmatprep.subr.mxu0 %v2084
    %2127 = vmatpush1.msra.mxu0 %v2083
    %2128 = vmatprep.subr.mxu0 %v2086
    %2129 = vmatpush1.msra.mxu0 %v2085
    %2130 = vmatprep.subr.mxu0 %v2088
    %2131 = vmatpush1.msra.mxu0 %v2087
    %2132 = vmatprep.subr.mxu0 0.0
    %2133 = vmatpush1.msra.mxu0 0.0
    %2134 = vmatprep.subr.mxu0 0.0
    %2135 = vmatpush1.msra.mxu0 0.0
    %2136 = vmatprep.subr.mxu0 0.0
    %2137 = vmatpush1.msra.mxu0 0.0
    %2138 = vmatprep.subr.mxu0 0.0
    %2139 = vmatpush1.msra.mxu0 0.0
    %2140 = vmatprep.subr.mxu0 0.0
    %2141 = vmatpush1.msra.mxu0 0.0
    %2142 = vmatprep.subr.mxu0 0.0
    %2143 = vmatpush1.msra.mxu0 0.0
    %2144 = vmatprep.subr.mxu0 0.0
    %2145 = vmatpush1.msra.mxu0 0.0
    %2146 = vmatprep.subr.mxu0 0.0
    %2147 = vmatpush1.msra.mxu0 0.0
    %2148 = vmatprep.subr.mxu0 0.0
    %2149 = vmatpush1.msra.mxu0 0.0
    %2150 = vmatprep.subr.mxu0 0.0
    %2151 = vmatpush1.msra.mxu0 0.0
    %2152 = vmatprep.subr.mxu0 0.0
    %2153 = vmatpush1.msra.mxu0 0.0
    %2154 = vmatprep.subr.mxu0 0.0
    %2155 = vmatpush1.msra.mxu0 0.0
    %2156 = vmatprep.mubr.f32.mxu0 %v2090
    %2157 = vmatmul.mubr.f32.gmra.mrb[0].mxu0 %v2045
    %v2158 = vpop.f32.mrb[0].mxu0
    %v2159 = vadd.f32 0.0, %v2158
    %v2160 = vpop.f32.mrb[0].mxu0
    %v2161 = vadd.f32 0.0, %v2160
    %2162 = vdwg.mxu0
    %v2164 = vsel %vm884, %v1932, 0
    %2166 = vmatprep.subr.mxu0 %v1935
    %2167 = vmatpush1.msra.mxu0 %v1934
    %2168 = vmatprep.subr.mxu0 %v1937
    %2169 = vmatpush1.msra.mxu0 %v1936
    %2170 = vmatprep.subr.mxu0 %v1939
    %2171 = vmatpush1.msra.mxu0 %v1938
    %2172 = vmatprep.subr.mxu0 %v1941
    %2173 = vmatpush1.msra.mxu0 %v1940
    %2174 = vmatprep.subr.mxu0 %v1943
    %2175 = vmatpush1.msra.mxu0 %v1942
    %2176 = vmatprep.subr.mxu0 %v1945
    %2177 = vmatpush1.msra.mxu0 %v1944
    %2178 = vmatprep.subr.mxu0 %v1947
    %2179 = vmatpush1.msra.mxu0 %v1946
    %2180 = vmatprep.subr.mxu0 %v1949
    %2181 = vmatpush1.msra.mxu0 %v1948
    %2182 = vmatprep.subr.mxu0 %v1951
    %2183 = vmatpush1.msra.mxu0 %v1950
    %2184 = vmatprep.subr.mxu0 %v1953
    %2185 = vmatpush1.msra.mxu0 %v1952
    %2186 = vmatprep.subr.mxu0 %v1955
    %2187 = vmatpush1.msra.mxu0 %v1954
    %2188 = vmatprep.subr.mxu0 %v1957
    %2189 = vmatpush1.msra.mxu0 %v1956
    %2190 = vmatprep.subr.mxu0 %v1959
    %2191 = vmatpush1.msra.mxu0 %v1958
    %2192 = vmatprep.subr.mxu0 %v1961
    %2193 = vmatpush1.msra.mxu0 %v1960
    %2194 = vmatprep.subr.mxu0 %v1963
    %2195 = vmatpush1.msra.mxu0 %v1962
    %2196 = vmatprep.subr.mxu0 %v1965
    %2197 = vmatpush1.msra.mxu0 %v1964
    %2198 = vmatprep.subr.mxu0 %v1967
    %2199 = vmatpush1.msra.mxu0 %v1966
    %2200 = vmatprep.subr.mxu0 %v1969
    %2201 = vmatpush1.msra.mxu0 %v1968
    %2202 = vmatprep.subr.mxu0 %v1971
    %2203 = vmatpush1.msra.mxu0 %v1970
    %2204 = vmatprep.subr.mxu0 %v1973
    %2205 = vmatpush1.msra.mxu0 %v1972
    %2206 = vmatprep.subr.mxu0 0.0
    %2207 = vmatpush1.msra.mxu0 0.0
    %2208 = vmatprep.subr.mxu0 0.0
    %2209 = vmatpush1.msra.mxu0 0.0
    %2210 = vmatprep.subr.mxu0 0.0
    %2211 = vmatpush1.msra.mxu0 0.0
    %2212 = vmatprep.subr.mxu0 0.0
    %2213 = vmatpush1.msra.mxu0 0.0
    %2214 = vmatprep.subr.mxu0 0.0
    %2215 = vmatpush1.msra.mxu0 0.0
    %2216 = vmatprep.subr.mxu0 0.0
    %2217 = vmatpush1.msra.mxu0 0.0
    %2218 = vmatprep.subr.mxu0 0.0
    %2219 = vmatpush1.msra.mxu0 0.0
    %2220 = vmatprep.subr.mxu0 0.0
    %2221 = vmatpush1.msra.mxu0 0.0
    %2222 = vmatprep.subr.mxu0 0.0
    %2223 = vmatpush1.msra.mxu0 0.0
    %2224 = vmatprep.subr.mxu0 0.0
    %2225 = vmatpush1.msra.mxu0 0.0
    %2226 = vmatprep.subr.mxu0 0.0
    %2227 = vmatpush1.msra.mxu0 0.0
    %2228 = vmatprep.subr.mxu0 0.0
    %2229 = vmatpush1.msra.mxu0 0.0
    %2230 = vmatprep.mubr.f32.mxu0 %v2164
    %2231 = vmatmul.mubr.f32.gmra.mrb[0].mxu0 %v1930
    %v2232 = vpop.f32.mrb[0].mxu0
    %v2233 = vadd.f32 %v2159, %v2232
    %v2234 = vpop.f32.mrb[0].mxu0
    %v2235 = vadd.f32 %v2161, %v2234
    %2236 = vdwg.mxu0
    %v2237 = vld [vmem:[%s1033] sm:$0x1f]
    %v2239 = vsel %vm645, %v2237, 0
    %2241 = vmatprep.subr.mxu0 %v1850
    %2242 = vmatpush1.msra.mxu0 %v1849
    %2243 = vmatprep.subr.mxu0 %v1861
    %2244 = vmatpush1.msra.mxu0 %v1858
    %2245 = vmatprep.subr.mxu0 0.0
    %2246 = vmatpush1.msra.mxu0 0.0
    %2247 = vmatprep.subr.mxu0 0.0
    %2248 = vmatpush1.msra.mxu0 0.0
    %2249 = vmatprep.subr.mxu0 0.0
    %2250 = vmatpush1.msra.mxu0 0.0
    %2251 = vmatprep.subr.mxu0 0.0
    %2252 = vmatpush1.msra.mxu0 0.0
    %2253 = vmatprep.subr.mxu0 0.0
    %2254 = vmatpush1.msra.mxu0 0.0
    %2255 = vmatprep.subr.mxu0 0.0
    %2256 = vmatpush1.msra.mxu0 0.0
    %2257 = vmatprep.subr.mxu0 0.0
    %2258 = vmatpush1.msra.mxu0 0.0
    %2259 = vmatprep.subr.mxu0 0.0
    %2260 = vmatpush1.msra.mxu0 0.0
    %2261 = vmatprep.subr.mxu0 0.0
    %2262 = vmatpush1.msra.mxu0 0.0
    %2263 = vmatprep.subr.mxu0 0.0
    %2264 = vmatpush1.msra.mxu0 0.0
    %2265 = vmatprep.subr.mxu0 0.0
    %2266 = vmatpush1.msra.mxu0 0.0
    %2267 = vmatprep.subr.mxu0 0.0
    %2268 = vmatpush1.msra.mxu0 0.0
    %2269 = vmatprep.subr.mxu0 0.0
    %2270 = vmatpush1.msra.mxu0 0.0
    %2271 = vmatprep.subr.mxu0 0.0
    %2272 = vmatpush1.msra.mxu0 0.0
    %2273 = vmatprep.subr.mxu0 0.0
    %2274 = vmatpush1.msra.mxu0 0.0
    %2275 = vmatprep.subr.mxu0 0.0
    %2276 = vmatpush1.msra.mxu0 0.0
    %2277 = vmatprep.subr.mxu0 0.0
    %2278 = vmatpush1.msra.mxu0 0.0
    %2279 = vmatprep.subr.mxu0 0.0
    %2280 = vmatpush1.msra.mxu0 0.0
    %2281 = vmatprep.subr.mxu0 0.0
    %2282 = vmatpush1.msra.mxu0 0.0
    %2283 = vmatprep.subr.mxu0 0.0
    %2284 = vmatpush1.msra.mxu0 0.0
    %2285 = vmatprep.subr.mxu0 0.0
    %2286 = vmatpush1.msra.mxu0 0.0
    %2287 = vmatprep.subr.mxu0 0.0
    %2288 = vmatpush1.msra.mxu0 0.0
    %2289 = vmatprep.subr.mxu0 0.0
    %2290 = vmatpush1.msra.mxu0 0.0
    %2291 = vmatprep.subr.mxu0 0.0
    %2292 = vmatpush1.msra.mxu0 0.0
    %2293 = vmatprep.subr.mxu0 0.0
    %2294 = vmatpush1.msra.mxu0 0.0
    %2295 = vmatprep.subr.mxu0 0.0
    %2296 = vmatpush1.msra.mxu0 0.0
    %2297 = vmatprep.subr.mxu0 0.0
    %2298 = vmatpush1.msra.mxu0 0.0
    %2299 = vmatprep.subr.mxu0 0.0
    %2300 = vmatpush1.msra.mxu0 0.0
    %2301 = vmatprep.subr.mxu0 0.0
    %2302 = vmatpush1.msra.mxu0 0.0
    %2303 = vmatprep.subr.mxu0 0.0
    %2304 = vmatpush1.msra.mxu0 0.0
    %2305 = vmatprep.mubr.f32.mxu0 0.0
    %2306 = vmatmul.mubr.f32.gmra.mrb[0].mxu0 %v2239
    %v2307 = vpop.f32.mrb[0].mxu0
    %v2308 = vadd.f32 0.0, %v2307
    %v2309 = vpop.f32.mrb[0].mxu0
    %v2310 = vadd.f32 0.0, %v2309
    %2311 = vdwg.mxu0
    %v2312 = vld [vmem:[%s1109] sm:$0xff]
    %v2313 = vld [vmem:[%s1109 + $0x8] sm:$0xff]
    %v2314 = vld [vmem:[%s1109 + $0x10] sm:$0xff]
    %v2315 = vld [vmem:[%s1109 + $0x18] sm:$0xff]
    %v2316 = vld [vmem:[%s1109 + $0x20] sm:$0xff]
    %v2317 = vld [vmem:[%s1109 + $0x28] sm:$0xff]
    %v2318 = vld [vmem:[%s1109 + $0x30] sm:$0xff]
    %v2319 = vld [vmem:[%s1109 + $0x38] sm:$0xff]
    %v2320 = vld [vmem:[%s1109 + $0x40] sm:$0xff]
    %v2321 = vld [vmem:[%s1109 + $0x48] sm:$0xff]
    %v2322 = vld [vmem:[%s1109 + $0x50] sm:$0xff]
    %v2323 = vld [vmem:[%s1109 + $0x58] sm:$0xff]
    %v2324 = vld [vmem:[%s1109 + $0x60] sm:$0xff]
    %v2325 = vld [vmem:[%s1109 + $0x68] sm:$0xff]
    %v2326 = vld [vmem:[%s1109 + $0x70] sm:$0xff]
    %v2327 = vld [vmem:[%s1109 + $0x78] sm:$0xff]
    %v2328 = vld [vmem:[%s1109 + $0x80] sm:$0xff]
    %v2329 = vld [vmem:[%s1109 + $0x88] sm:$0xff]
    %v2330 = vld [vmem:[%s1109 + $0x90] sm:$0xff]
    %v2331 = vld [vmem:[%s1109 + $0x98] sm:$0xff]
    %v2332 = vld [vmem:[%s1109 + $0xa0] sm:$0xff]
    %v2333 = vld [vmem:[%s1109 + $0xa8] sm:$0xff]
    %v2334 = vld [vmem:[%s1109 + $0xb0] sm:$0xff]
    %v2335 = vld [vmem:[%s1109 + $0xb8] sm:$0xff]
    %v2336 = vld [vmem:[%s1109 + $0xc0] sm:$0xff]
    %v2337 = vld [vmem:[%s1109 + $0xc8] sm:$0xff]
    %v2338 = vld [vmem:[%s1109 + $0xd0] sm:$0xff]
    %v2339 = vld [vmem:[%s1109 + $0xd8] sm:$0xff]
    %v2340 = vld [vmem:[%s1109 + $0xe0] sm:$0xff]
    %v2341 = vld [vmem:[%s1109 + $0xe8] sm:$0xff]
    %v2342 = vld [vmem:[%s1109 + $0xf0] sm:$0xff]
    %v2343 = vld [vmem:[%s1109 + $0xf8] sm:$0xff]
    %v2344 = vld [vmem:[%s1109 + $0x100] sm:$0xff]
    %v2345 = vld [vmem:[%s1109 + $0x108] sm:$0xff]
    %v2346 = vld [vmem:[%s1109 + $0x110] sm:$0xff]
    %v2347 = vld [vmem:[%s1109 + $0x118] sm:$0xff]
    %v2348 = vld [vmem:[%s1109 + $0x120] sm:$0xff]
    %v2349 = vld [vmem:[%s1109 + $0x128] sm:$0xff]
    %v2350 = vld [vmem:[%s1109 + $0x130] sm:$0xff]
    %v2351 = vld [vmem:[%s1109 + $0x138] sm:$0xff]
    %v2353 = vsel %vm884, %v2310, 0
    %2355 = vmatprep.subr.mxu0 %v2313
    %2356 = vmatpush1.msra.mxu0 %v2312
    %2357 = vmatprep.subr.mxu0 %v2315
    %2358 = vmatpush1.msra.mxu0 %v2314
    %2359 = vmatprep.subr.mxu0 %v2317
    %2360 = vmatpush1.msra.mxu0 %v2316
    %2361 = vmatprep.subr.mxu0 %v2319
    %2362 = vmatpush1.msra.mxu0 %v2318
    %2363 = vmatprep.subr.mxu0 %v2321
    %2364 = vmatpush1.msra.mxu0 %v2320
    %2365 = vmatprep.subr.mxu0 %v2323
    %2366 = vmatpush1.msra.mxu0 %v2322
    %2367 = vmatprep.subr.mxu0 %v2325
    %2368 = vmatpush1.msra.mxu0 %v2324
    %2369 = vmatprep.subr.mxu0 %v2327
    %2370 = vmatpush1.msra.mxu0 %v2326
    %2371 = vmatprep.subr.mxu0 %v2329
    %2372 = vmatpush1.msra.mxu0 %v2328
    %2373 = vmatprep.subr.mxu0 %v2331
    %2374 = vmatpush1.msra.mxu0 %v2330
    %2375 = vmatprep.subr.mxu0 %v2333
    %2376 = vmatpush1.msra.mxu0 %v2332
    %2377 = vmatprep.subr.mxu0 %v2335
    %2378 = vmatpush1.msra.mxu0 %v2334
    %2379 = vmatprep.subr.mxu0 %v2337
    %2380 = vmatpush1.msra.mxu0 %v2336
    %2381 = vmatprep.subr.mxu0 %v2339
    %2382 = vmatpush1.msra.mxu0 %v2338
    %2383 = vmatprep.subr.mxu0 %v2341
    %2384 = vmatpush1.msra.mxu0 %v2340
    %2385 = vmatprep.subr.mxu0 %v2343
    %2386 = vmatpush1.msra.mxu0 %v2342
    %2387 = vmatprep.subr.mxu0 %v2345
    %2388 = vmatpush1.msra.mxu0 %v2344
    %2389 = vmatprep.subr.mxu0 %v2347
    %2390 = vmatpush1.msra.mxu0 %v2346
    %2391 = vmatprep.subr.mxu0 %v2349
    %2392 = vmatpush1.msra.mxu0 %v2348
    %2393 = vmatprep.subr.mxu0 %v2351
    %2394 = vmatpush1.msra.mxu0 %v2350
    %2395 = vmatprep.subr.mxu0 0.0
    %2396 = vmatpush1.msra.mxu0 0.0
    %2397 = vmatprep.subr.mxu0 0.0
    %2398 = vmatpush1.msra.mxu0 0.0
    %2399 = vmatprep.subr.mxu0 0.0
    %2400 = vmatpush1.msra.mxu0 0.0
    %2401 = vmatprep.subr.mxu0 0.0
    %2402 = vmatpush1.msra.mxu0 0.0
    %2403 = vmatprep.subr.mxu0 0.0
    %2404 = vmatpush1.msra.mxu0 0.0
    %2405 = vmatprep.subr.mxu0 0.0
    %2406 = vmatpush1.msra.mxu0 0.0
    %2407 = vmatprep.subr.mxu0 0.0
    %2408 = vmatpush1.msra.mxu0 0.0
    %2409 = vmatprep.subr.mxu0 0.0
    %2410 = vmatpush1.msra.mxu0 0.0
    %2411 = vmatprep.subr.mxu0 0.0
    %2412 = vmatpush1.msra.mxu0 0.0
    %2413 = vmatprep.subr.mxu0 0.0
    %2414 = vmatpush1.msra.mxu0 0.0
    %2415 = vmatprep.subr.mxu0 0.0
    %2416 = vmatpush1.msra.mxu0 0.0
    %2417 = vmatprep.subr.mxu0 0.0
    %2418 = vmatpush1.msra.mxu0 0.0
    %2419 = vmatprep.mubr.f32.mxu0 %v2353
    %2420 = vmatmul.mubr.f32.gmra.mrb[0].mxu0 %v2308
    %v2421 = vpop.f32.mrb[0].mxu0
    %v2422 = vadd.f32 0.0, %v2421
    %v2423 = vpop.f32.mrb[0].mxu0
    %v2424 = vadd.f32 0.0, %v2423
    %2425 = vdwg.mxu0
    %v2426 = vadd.f32 %v2233, %v2422
    %v2427 = vadd.f32 %v2235, %v2424
    %v2428 = vld [vmem:[%s6] sm:$0x3]
    %v2430 = vlaneseq
    %v2431 = vshrl.u32 %v2430, 7
    %v2432 = vsub.s32 0, %v2431
    %v2433 = vrot.slane %v2428, %v2432
    %v2434 = vlaneseq
    %v2435 = vshrl.u32 %v2434, 7
    %v2436 = vsub.s32 1, %v2435
    %v2437 = vrot.slane %v2428, %v2436
    %v2440 = vadd.f32 %v2426, %v2433
    %v2441 = vadd.f32 %v2427, %v2437
    %v2442 = vmax.f32 %v2440, 0.0
    %v2443 = vmax.f32 %v2441, 0.0
    %v2444 = vld [vmem:[%s7] sm:$0x1f]
    %v2445 = vld [vmem:[%s7 + $0x8] sm:$0x1f]
    %v2446 = vmul.f32 %v2442, %v2444
    %v2447 = vmul.f32 %v2443, %v2445
    %v2448 = vsel %vm1246, %v2446, 0.0
    %v2449 = vsel %vm1248, %v2447, 0.0
    %v2450 = vadd.f32 %v2448, %v2449
    %2451 = vadd.xlane.f32.xlu0 %v2450
    %v2452 = vpop.xlane.xlu0 %2451
    %v2453 = vsel %vm1246, %v2452, 0.0
    %v2454 = vrot.slane %v2453, 4
    %v2455 = vadd.f32 %v2453, %v2454
    %v2456 = vrot.slane %v2455, 2
    %v2457 = vadd.f32 %v2455, %v2456
    %v2458 = vrot.slane %v2457, 1
    %v2459 = vadd.f32 %v2457, %v2458
    %v2460 = vld [vmem:[#allocation2] sm:$0x1]
    %v2461 = vadd.f32 %v2459, %v2460
    %v2463 = vlaneseq
    %v2464 = vshrl.u32 %v2463, 7
    %v2465 = vsub.s32 0, %v2464
    %v2466 = vrot.slane %v2461, %v2465
    %2467 = vrot.lane.b32.xlu0 %v2466, 1
    %v2468 = vpop.permute.xlu0 %2467
    %vm2470 = vcmask 8200
    %2471 = vst.msk [vmem:[#allocation6] sm:$0x1] %vm2470, %v2468
    // Predicated region
    $region42: #{cnn_i4_forward.1} parent=1 // pred_check
      _
    $region43: #{cnn_i4_forward.1} parent=1 // pred_check_branch
      %2473 = sbr.rel (0) target = $region45
    $region44: #{cnn_i4_forward.1} parent=1 // pred_region
      %s2475 = ssub.s32 16, 16
      %2476 = vsyncadd [#allocation5], %s2475
      %s2478 = sshll.u32 [#allocation6], 4
      %s2479 = int_to_ptr.vmem [resolvable:$true] %s2478
      %2481 = dma.vmem_to_hbm [thread:$0]  %s2479, 16, %s9, [#allocation5]
    $region45: #{cnn_i4_forward.1} parent=1 // pred_fallthru
      _
    // Predicated region
    $region46: #{cnn_i4_forward.1} parent=1 // pred_check
      _
    $region47: #{cnn_i4_forward.1} parent=1 // pred_check_branch
      %2483 = sbr.rel (0) target = $region49
    $region48: #{cnn_i4_forward.1} parent=1 // pred_region
      %2484 = dma.done [#allocation5], 16
    $region49: #{cnn_i4_forward.1} parent=1 // pred_fallthru
      _
    %2485 = vsyncpa [#allocation4], 1
    %2486 = vsyncpa [#allocation5], 1

</llo_original>
